<compile_context>
chip_gen: v6e
topology: v6e:2x2x1
jax: 0.10.0
libtpu: 0.0.40
codegen_flags: <defaults>
</compile_context>

<pallas_src>
import functools

import numpy as np
import jax
import jax.numpy as jnp
from jax.experimental import pallas as pl
from jax.experimental.pallas import tpu as pltpu

# ---- synthetic config (small shapes) ---------------------------------------
NUM_CONV = 2
CONV_DIM = 8
NUM_FC = 2
FC_DIM = 32

MXU_DTYPE = jnp.bfloat16   # matmul operand dtype (accumulation stays f32)
PAD_ROWS = 8               # tile-aligned offset of the real rows inside the
                           # zero-initialised H-padding scratch

_VMEM = pl.BlockSpec(memory_space=pltpu.MemorySpace.VMEM)


# ---- Pallas kernels ---------------------------------------------------------
def _conv_stack_kernel(num_conv, *refs):
    """All 3x3 conv+bias+ReLU layers fused, activations resident in VMEM.

    refs layout:
      x_ref:                (N, H, W*C0)        f32   merged-NHWC input
      per layer l:
        w_ref:              (3, W*Cin, W*Cout)  bf16  banded weights (per kh)
        b_ref:              (1, W*Cout)         f32   bias tiled over w
      o_ref:                (N, H, W*Clast)     f32
      per layer l (scratch):(N, H+2*PAD_ROWS, W*Cin) f32  zero-padded rows
    """
    n_in = 1 + 2 * num_conv
    x_ref = refs[0]
    layer_refs = refs[1:n_in]
    o_ref = refs[n_in]
    pad_refs = refs[n_in + 1:]

    N = x_ref.shape[0]
    H = x_ref.shape[1]

    z = x_ref[...]                                   # (N, H, W*Cin) f32
    for l in range(num_conv):
        w_ref = layer_refs[2 * l]                    # (3, W*Cin, W*Cout) bf16
        b_ref = layer_refs[2 * l + 1]                # (1, W*Cout) f32
        pad_ref = pad_refs[l]                        # (N, H+2*PAD_ROWS, W*Cin)
        wco = w_ref.shape[-1]

        # In-kernel zero padding of the H border: scratch is zeroed and the
        # real rows are written at sublane offset PAD_ROWS (a multiple of 8),
        # so the store is fully tile-aligned (no masked stores).
        pad_ref[...] = jnp.zeros_like(pad_ref)
        pad_ref[:, PAD_ROWS:PAD_ROWS + H, :] = z
        zp = pad_ref[...]

        # Accumulator initialised with the bias (already tiled over w).
        acc = jnp.broadcast_to(b_ref[...], (N, H, wco)).astype(jnp.float32)

        # 3 banded matmuls (one per kernel row kh). The kw taps and the SAME
        # padding along W are folded into the banded weight, so each matmul
        # is a lane-dense K = W*Cin contraction on the MXU.
        for kh in range(3):
            patch = zp[:, PAD_ROWS - 1 + kh: PAD_ROWS - 1 + kh + H, :]
            acc = acc + jnp.einsum(
                "nhk,ko->nho",
                patch.astype(MXU_DTYPE), w_ref[kh],
                preferred_element_type=jnp.float32)

        z = jnp.maximum(acc, 0.0)                    # bias+ReLU in f32

    o_ref[...] = z.astype(o_ref.dtype)


def _fc_stack_kernel(num_fc, *refs):
    """All Linear+ReLU layers fused: y = relu(x @ W + b) chained in VMEM."""
    n_in = 1 + 2 * num_fc
    x_ref = refs[0]
    layer_refs = refs[1:n_in]
    o_ref = refs[n_in]

    z = x_ref[...]                                   # (N, D) f32
    for l in range(num_fc):
        w_ref = layer_refs[2 * l]                    # (D, F) bf16
        b_ref = layer_refs[2 * l + 1]                # (1, F) f32
        y = jnp.dot(z.astype(MXU_DTYPE), w_ref[...],
                    preferred_element_type=jnp.float32)
        z = jnp.maximum(y + b_ref[...], 0.0)         # f32 epilogue
    o_ref[...] = z.astype(o_ref.dtype)


# ---- wrappers ---------------------------------------------------------------
def conv_stack(xm, conv_kparams):
    """xm: (N, H, W*C0) f32 merged-NHWC; conv_kparams: [(w_banded, b_tiled)]."""
    N, H, _ = xm.shape
    num_conv = len(conv_kparams)
    wco_last = conv_kparams[-1][0].shape[-1]
    flat_in = [xm]
    for (w, b) in conv_kparams:
        flat_in += [w, b]
    scratch = [pltpu.VMEM((N, H + 2 * PAD_ROWS, w.shape[1]), jnp.float32)
               for (w, _) in conv_kparams]
    return pl.pallas_call(
        functools.partial(_conv_stack_kernel, num_conv),
        out_shape=jax.ShapeDtypeStruct((N, H, wco_last), jnp.float32),
        in_specs=[_VMEM] * len(flat_in),
        out_specs=_VMEM,
        scratch_shapes=scratch,
    )(*flat_in)


def fc_stack(feat, fc_kparams):
    N = feat.shape[0]
    f_last = fc_kparams[-1][0].shape[-1]
    flat_in = [feat]
    for (w, b) in fc_kparams:
        flat_in += [w, b]
    return pl.pallas_call(
        functools.partial(_fc_stack_kernel, len(fc_kparams)),
        out_shape=jax.ShapeDtypeStruct((N, f_last), jnp.float32),
        in_specs=[_VMEM] * len(flat_in),
        out_specs=_VMEM,
    )(*flat_in)


@jax.jit
def box_head_forward(x_nchw, kparams):
    """Full FastRCNNConvFCHead forward. x_nchw: (N, C, H, W) float32."""
    N, C, H, W = x_nchw.shape
    # Single tiny layout change of the raw input (4 KiB). The large post-conv
    # NHWC->NCHW transpose is eliminated by pre-permuting the fc1 weight rows.
    x = jnp.transpose(x_nchw, (0, 2, 3, 1)).reshape(N, H, W * C)
    if kparams["convs"]:
        x = conv_stack(x, kparams["convs"])
    feat = x.reshape(N, -1)     # contiguous -> free metadata reshape in XLA
    if kparams["fcs"]:
        feat = fc_stack(feat, kparams["fcs"])
    return feat


# ---- parameter prep (host side, one time) ------------------------------------
def _banded_conv_weight(w_hwio, W):
    """(3,3,Ci,Co) HWIO -> (3, W*Ci, W*Co) block-Toeplitz matrices, one per kh.

    SAME padding along W is absorbed into the band edges (missing taps simply
    have zero blocks), so the kernel needs no W padding at all.
    """
    w = np.asarray(w_hwio, np.float32)
    _, _, ci, co = w.shape
    out = np.zeros((3, W * ci, W * co), np.float32)
    for kh in range(3):
        for x in range(W):
            for kw in range(3):
                wi = x + kw - 1
                if 0 <= wi < W:
                    out[kh, wi * ci:(wi + 1) * ci, x * co:(x + 1) * co] = w[kh, kw]
    return out


def prepare_kernel_params(params, in_channels, H, W):
    """One-time transform of module params into the kernel-friendly form."""
    kp = {"convs": [], "fcs": []}
    c = in_channels
    for (w, b) in params["convs"]:
        wb = jnp.asarray(_banded_conv_weight(w, W), MXU_DTYPE)
        bm = jnp.tile(jnp.asarray(b, jnp.float32), W).reshape(1, -1)
        kp["convs"].append((wb, bm))
        c = w.shape[-1]
    first = True
    for (w, b) in params["fcs"]:
        w = jnp.asarray(w, jnp.float32)
        if first:
            # fc1 rows are in NCHW-flatten order (PyTorch). Re-permute them to
            # the NHWC-merged flatten order produced by the conv kernel so no
            # runtime transpose of the activation is needed.
            F = w.shape[-1]
            w = w.reshape(c, H, W, F).transpose(1, 2, 0, 3).reshape(H * W * c, F)
            first = False
        kp["fcs"].append((w.astype(MXU_DTYPE),
                          jnp.asarray(b, jnp.float32).reshape(1, -1)))
    return kp


# ---- deterministic parameter init (shapes per __init__) ---------------------
def init_params(key, in_channels, height, width):
    params = {"convs": [], "fcs": []}
    cin = in_channels
    for _ in range(NUM_CONV):
        key, kw, kb = jax.random.split(key, 3)
        fan_out = 3 * 3 * CONV_DIM  # c2_msra_fill: kaiming_normal fan_out
        w = jax.random.normal(kw, (3, 3, cin, CONV_DIM), jnp.float32) * jnp.sqrt(
            2.0 / fan_out)
        # detectron2 inits biases to 0; use small random values here so the
        # bias path of the kernel is actually exercised by the check.
        b = 0.1 * jax.random.normal(kb, (CONV_DIM,), jnp.float32)
        params["convs"].append((w, b))
        cin = CONV_DIM
    d = (CONV_DIM if NUM_CONV > 0 else in_channels) * height * width
    for _ in range(NUM_FC):
        key, kw, kb = jax.random.split(key, 3)
        bound = jnp.sqrt(3.0 / d)  # c2_xavier_fill: kaiming_uniform(a=1)
        w = jax.random.uniform(kw, (d, FC_DIM), jnp.float32, -bound, bound)
        b = 0.1 * jax.random.normal(kb, (FC_DIM,), jnp.float32)
        params["fcs"].append((w, b))
        d = FC_DIM
    return params


# ---- pure-JAX f32 reference (PyTorch semantics) ------------------------------
def reference_forward(x_nchw, params):
    x = x_nchw
    for (w, b) in params["convs"]:
        x = jax.lax.conv_general_dilated(
            x, w, (1, 1), "SAME",
            dimension_numbers=("NCHW", "HWIO", "NCHW"))
        x = jnp.maximum(x + b.reshape(1, -1, 1, 1), 0.0)
    x = x.reshape(x.shape[0], -1)
    for (w, b) in params["fcs"]:
        x = jnp.maximum(x @ w + b, 0.0)
    return x


if __name__ == "__main__":
    N, C, H, W = 2, 4, 16, 16
    key = jax.random.PRNGKey(0)
    kx, kp = jax.random.split(key)
    x = jax.random.normal(kx, (N, C, H, W), jnp.float32)
    params = init_params(kp, C, H, W)
    kparams = prepare_kernel_params(params, C, H, W)

    out = jax.block_until_ready(box_head_forward(x, kparams))
    ref = jax.block_until_ready(reference_forward(x, params))

    assert out.shape == (N, FC_DIM), out.shape
    # Tolerance accounts for bf16 MXU operands (accumulation is f32).
    err = float(jnp.max(jnp.abs(out - ref)))
    assert jnp.allclose(out, ref, rtol=5e-2, atol=5e-2), (
        f"mismatch vs reference (max abs err {err})")
    print("KERNEL_OK")
</pallas_src>

<mosaic_0001>
module attributes {stable_mosaic.version = 11 : i64} {
  func.func @_conv_stack_kernel(%arg0: memref<2x16x64xf32, #tpu.memory_space<vmem>>, %arg1: memref<3x64x128xbf16, #tpu.memory_space<vmem>>, %arg2: memref<1x128xf32, #tpu.memory_space<vmem>>, %arg3: memref<3x128x128xbf16, #tpu.memory_space<vmem>>, %arg4: memref<1x128xf32, #tpu.memory_space<vmem>>, %arg5: memref<2x16x128xf32, #tpu.memory_space<vmem>>, %arg6: memref<2x32x64xf32, #tpu.memory_space<vmem>>, %arg7: memref<2x32x128xf32, #tpu.memory_space<vmem>>) attributes {dimension_semantics = [], scalar_prefetch = 0 : i64, scratch_operands = 2 : i64, tpu.core_type = #tpu.core_type<tc>} {
    %c0 = arith.constant 0 : index
    %c0_0 = arith.constant 0 : index
    %c0_1 = arith.constant 0 : index
    %0 = vector.load %arg0[%c0, %c0_0, %c0_1] : memref<2x16x64xf32, #tpu.memory_space<vmem>>, vector<2x16x64xf32>
    %cst = arith.constant 0.000000e+00 : f32
    %1 = vector.broadcast %cst : f32 to vector<2x32x64xf32>
    %c0_2 = arith.constant 0 : index
    %c0_3 = arith.constant 0 : index
    %c0_4 = arith.constant 0 : index
    %2 = vector.load %arg6[%c0_2, %c0_3, %c0_4] : memref<2x32x64xf32, #tpu.memory_space<vmem>>, vector<2x32x64xf32>
    tpu.vector_store %arg6[%c0_2, %c0_3, %c0_4], %1 {strides = array<i32>} : memref<2x32x64xf32, #tpu.memory_space<vmem>>, vector<2x32x64xf32>,
    %c0_5 = arith.constant 0 : index
    %c8 = arith.constant 8 : index
    %c0_6 = arith.constant 0 : index
    %3 = vector.load %arg6[%c0_5, %c8, %c0_6] : memref<2x32x64xf32, #tpu.memory_space<vmem>>, vector<2x16x64xf32>
    tpu.vector_store %arg6[%c0_5, %c8, %c0_6], %0 {strides = array<i32>} : memref<2x32x64xf32, #tpu.memory_space<vmem>>, vector<2x16x64xf32>,
    %c0_7 = arith.constant 0 : index
    %c0_8 = arith.constant 0 : index
    %c0_9 = arith.constant 0 : index
    %4 = vector.load %arg6[%c0_7, %c0_8, %c0_9] : memref<2x32x64xf32, #tpu.memory_space<vmem>>, vector<2x32x64xf32>
    %c0_10 = arith.constant 0 : index
    %c0_11 = arith.constant 0 : index
    %5 = vector.load %arg2[%c0_10, %c0_11] : memref<1x128xf32, #tpu.memory_space<vmem>>, vector<1x128xf32>
    %6 = vector.shape_cast %5 : vector<1x128xf32> to vector<1x1x128xf32>
    %7 = vector.broadcast %6 : vector<1x1x128xf32> to vector<2x16x128xf32>
    %8 = vector.extract_strided_slice %4 {offsets = [0, 7, 0], sizes = [2, 16, 64], strides = [1, 1, 1]} : vector<2x32x64xf32> to vector<2x16x64xf32>
    %9 = arith.truncf %8 : vector<2x16x64xf32> to vector<2x16x64xbf16>
    %c0_12 = arith.constant 0 : index
    %c0_13 = arith.constant 0 : index
    %c0_14 = arith.constant 0 : index
    %10 = vector.load %arg1[%c0_12, %c0_13, %c0_14] : memref<3x64x128xbf16, #tpu.memory_space<vmem>>, vector<1x64x128xbf16>
    %11 = vector.shape_cast %10 : vector<1x64x128xbf16> to vector<64x128xbf16>
    "tpu.trace_start"() <{level = 10 : i32, message = "nhk,ko->nho"}> : () -> ()
    %cst_15 = arith.constant dense<0.000000e+00> : vector<2x16x128xf32>
    %12 = tpu.matmul %9, %11, %cst_15 {dimension_numbers = #tpu.dot_dimension_numbers<[2], [0], [0, 1], [1], [0, 0, 0, 1, 1, 1], [], []>} : vector<2x16x64xbf16>, vector<64x128xbf16>, vector<2x16x128xf32> -> vector<2x16x128xf32>
    "tpu.trace_stop"() : () -> ()
    %13 = arith.addf %7, %12 : vector<2x16x128xf32>
    %14 = vector.extract_strided_slice %4 {offsets = [0, 8, 0], sizes = [2, 16, 64], strides = [1, 1, 1]} : vector<2x32x64xf32> to vector<2x16x64xf32>
    %15 = arith.truncf %14 : vector<2x16x64xf32> to vector<2x16x64xbf16>
    %c1 = arith.constant 1 : index
    %c0_16 = arith.constant 0 : index
    %c0_17 = arith.constant 0 : index
    %16 = vector.load %arg1[%c1, %c0_16, %c0_17] : memref<3x64x128xbf16, #tpu.memory_space<vmem>>, vector<1x64x128xbf16>
    %17 = vector.shape_cast %16 : vector<1x64x128xbf16> to vector<64x128xbf16>
    "tpu.trace_start"() <{level = 10 : i32, message = "nhk,ko->nho"}> : () -> ()
    %cst_18 = arith.constant dense<0.000000e+00> : vector<2x16x128xf32>
    %18 = tpu.matmul %15, %17, %cst_18 {dimension_numbers = #tpu.dot_dimension_numbers<[2], [0], [0, 1], [1], [0, 0, 0, 1, 1, 1], [], []>} : vector<2x16x64xbf16>, vector<64x128xbf16>, vector<2x16x128xf32> -> vector<2x16x128xf32>
    "tpu.trace_stop"() : () -> ()
    %19 = arith.addf %13, %18 : vector<2x16x128xf32>
    %20 = vector.extract_strided_slice %4 {offsets = [0, 9, 0], sizes = [2, 16, 64], strides = [1, 1, 1]} : vector<2x32x64xf32> to vector<2x16x64xf32>
    %21 = arith.truncf %20 : vector<2x16x64xf32> to vector<2x16x64xbf16>
    %c2 = arith.constant 2 : index
    %c0_19 = arith.constant 0 : index
    %c0_20 = arith.constant 0 : index
    %22 = vector.load %arg1[%c2, %c0_19, %c0_20] : memref<3x64x128xbf16, #tpu.memory_space<vmem>>, vector<1x64x128xbf16>
    %23 = vector.shape_cast %22 : vector<1x64x128xbf16> to vector<64x128xbf16>
    "tpu.trace_start"() <{level = 10 : i32, message = "nhk,ko->nho"}> : () -> ()
    %cst_21 = arith.constant dense<0.000000e+00> : vector<2x16x128xf32>
    %24 = tpu.matmul %21, %23, %cst_21 {dimension_numbers = #tpu.dot_dimension_numbers<[2], [0], [0, 1], [1], [0, 0, 0, 1, 1, 1], [], []>} : vector<2x16x64xbf16>, vector<64x128xbf16>, vector<2x16x128xf32> -> vector<2x16x128xf32>
    "tpu.trace_stop"() : () -> ()
    %25 = arith.addf %19, %24 : vector<2x16x128xf32>
    %cst_22 = arith.constant 0.000000e+00 : f32
    %26 = vector.broadcast %cst_22 : f32 to vector<2x16x128xf32>
    %27 = arith.maximumf %25, %26 : vector<2x16x128xf32>
    %cst_23 = arith.constant 0.000000e+00 : f32
    %28 = vector.broadcast %cst_23 : f32 to vector<2x32x128xf32>
    %c0_24 = arith.constant 0 : index
    %c0_25 = arith.constant 0 : index
    %c0_26 = arith.constant 0 : index
    %29 = vector.load %arg7[%c0_24, %c0_25, %c0_26] : memref<2x32x128xf32, #tpu.memory_space<vmem>>, vector<2x32x128xf32>
    tpu.vector_store %arg7[%c0_24, %c0_25, %c0_26], %28 {strides = array<i32>} : memref<2x32x128xf32, #tpu.memory_space<vmem>>, vector<2x32x128xf32>,
    %c0_27 = arith.constant 0 : index
    %c8_28 = arith.constant 8 : index
    %c0_29 = arith.constant 0 : index
    %30 = vector.load %arg7[%c0_27, %c8_28, %c0_29] : memref<2x32x128xf32, #tpu.memory_space<vmem>>, vector<2x16x128xf32>
    tpu.vector_store %arg7[%c0_27, %c8_28, %c0_29], %27 {strides = array<i32>} : memref<2x32x128xf32, #tpu.memory_space<vmem>>, vector<2x16x128xf32>,
    %c0_30 = arith.constant 0 : index
    %c0_31 = arith.constant 0 : index
    %c0_32 = arith.constant 0 : index
    %31 = vector.load %arg7[%c0_30, %c0_31, %c0_32] : memref<2x32x128xf32, #tpu.memory_space<vmem>>, vector<2x32x128xf32>
    %c0_33 = arith.constant 0 : index
    %c0_34 = arith.constant 0 : index
    %32 = vector.load %arg4[%c0_33, %c0_34] : memref<1x128xf32, #tpu.memory_space<vmem>>, vector<1x128xf32>
    %33 = vector.shape_cast %32 : vector<1x128xf32> to vector<1x1x128xf32>
    %34 = vector.broadcast %33 : vector<1x1x128xf32> to vector<2x16x128xf32>
    %35 = vector.extract_strided_slice %31 {offsets = [0, 7, 0], sizes = [2, 16, 128], strides = [1, 1, 1]} : vector<2x32x128xf32> to vector<2x16x128xf32>
    %36 = arith.truncf %35 : vector<2x16x128xf32> to vector<2x16x128xbf16>
    %c0_35 = arith.constant 0 : index
    %c0_36 = arith.constant 0 : index
    %c0_37 = arith.constant 0 : index
    %37 = vector.load %arg3[%c0_35, %c0_36, %c0_37] : memref<3x128x128xbf16, #tpu.memory_space<vmem>>, vector<1x128x128xbf16>
    %38 = vector.shape_cast %37 : vector<1x128x128xbf16> to vector<128x128xbf16>
    "tpu.trace_start"() <{level = 10 : i32, message = "nhk,ko->nho"}> : () -> ()
    %cst_38 = arith.constant dense<0.000000e+00> : vector<2x16x128xf32>
    %39 = tpu.matmul %36, %38, %cst_38 {dimension_numbers = #tpu.dot_dimension_numbers<[2], [0], [0, 1], [1], [0, 0, 0, 1, 1, 1], [], []>} : vector<2x16x128xbf16>, vector<128x128xbf16>, vector<2x16x128xf32> -> vector<2x16x128xf32>
    "tpu.trace_stop"() : () -> ()
    %40 = arith.addf %34, %39 : vector<2x16x128xf32>
    %41 = vector.extract_strided_slice %31 {offsets = [0, 8, 0], sizes = [2, 16, 128], strides = [1, 1, 1]} : vector<2x32x128xf32> to vector<2x16x128xf32>
    %42 = arith.truncf %41 : vector<2x16x128xf32> to vector<2x16x128xbf16>
    %c1_39 = arith.constant 1 : index
    %c0_40 = arith.constant 0 : index
    %c0_41 = arith.constant 0 : index
    %43 = vector.load %arg3[%c1_39, %c0_40, %c0_41] : memref<3x128x128xbf16, #tpu.memory_space<vmem>>, vector<1x128x128xbf16>
    %44 = vector.shape_cast %43 : vector<1x128x128xbf16> to vector<128x128xbf16>
    "tpu.trace_start"() <{level = 10 : i32, message = "nhk,ko->nho"}> : () -> ()
    %cst_42 = arith.constant dense<0.000000e+00> : vector<2x16x128xf32>
    %45 = tpu.matmul %42, %44, %cst_42 {dimension_numbers = #tpu.dot_dimension_numbers<[2], [0], [0, 1], [1], [0, 0, 0, 1, 1, 1], [], []>} : vector<2x16x128xbf16>, vector<128x128xbf16>, vector<2x16x128xf32> -> vector<2x16x128xf32>
    "tpu.trace_stop"() : () -> ()
    %46 = arith.addf %40, %45 : vector<2x16x128xf32>
    %47 = vector.extract_strided_slice %31 {offsets = [0, 9, 0], sizes = [2, 16, 128], strides = [1, 1, 1]} : vector<2x32x128xf32> to vector<2x16x128xf32>
    %48 = arith.truncf %47 : vector<2x16x128xf32> to vector<2x16x128xbf16>
    %c2_43 = arith.constant 2 : index
    %c0_44 = arith.constant 0 : index
    %c0_45 = arith.constant 0 : index
    %49 = vector.load %arg3[%c2_43, %c0_44, %c0_45] : memref<3x128x128xbf16, #tpu.memory_space<vmem>>, vector<1x128x128xbf16>
    %50 = vector.shape_cast %49 : vector<1x128x128xbf16> to vector<128x128xbf16>
    "tpu.trace_start"() <{level = 10 : i32, message = "nhk,ko->nho"}> : () -> ()
    %cst_46 = arith.constant dense<0.000000e+00> : vector<2x16x128xf32>
    %51 = tpu.matmul %48, %50, %cst_46 {dimension_numbers = #tpu.dot_dimension_numbers<[2], [0], [0, 1], [1], [0, 0, 0, 1, 1, 1], [], []>} : vector<2x16x128xbf16>, vector<128x128xbf16>, vector<2x16x128xf32> -> vector<2x16x128xf32>
    "tpu.trace_stop"() : () -> ()
    %52 = arith.addf %46, %51 : vector<2x16x128xf32>
    %cst_47 = arith.constant 0.000000e+00 : f32
    %53 = vector.broadcast %cst_47 : f32 to vector<2x16x128xf32>
    %54 = arith.maximumf %52, %53 : vector<2x16x128xf32>
    %c0_48 = arith.constant 0 : index
    %c0_49 = arith.constant 0 : index
    %c0_50 = arith.constant 0 : index
    %55 = vector.load %arg5[%c0_48, %c0_49, %c0_50] : memref<2x16x128xf32, #tpu.memory_space<vmem>>, vector<2x16x128xf32>
    tpu.vector_store %arg5[%c0_48, %c0_49, %c0_50], %54 {strides = array<i32>} : memref<2x16x128xf32, #tpu.memory_space<vmem>>, vector<2x16x128xf32>,
    return
  }
}

module attributes {stable_mosaic.version = 11 : i64} {
  func.func @_fc_stack_kernel(%arg0: memref<2x2048xf32, #tpu.memory_space<vmem>>, %arg1: memref<2048x32xbf16, #tpu.memory_space<vmem>>, %arg2: memref<1x32xf32, #tpu.memory_space<vmem>>, %arg3: memref<32x32xbf16, #tpu.memory_space<vmem>>, %arg4: memref<1x32xf32, #tpu.memory_space<vmem>>, %arg5: memref<2x32xf32, #tpu.memory_space<vmem>>) attributes {dimension_semantics = [], scalar_prefetch = 0 : i64, scratch_operands = 0 : i64, tpu.core_type = #tpu.core_type<tc>} {
    %c0 = arith.constant 0 : index
    %c0_0 = arith.constant 0 : index
    %0 = vector.load %arg0[%c0, %c0_0] : memref<2x2048xf32, #tpu.memory_space<vmem>>, vector<2x2048xf32>
    %1 = arith.truncf %0 : vector<2x2048xf32> to vector<2x2048xbf16>
    %c0_1 = arith.constant 0 : index
    %c0_2 = arith.constant 0 : index
    %2 = vector.load %arg1[%c0_1, %c0_2] : memref<2048x32xbf16, #tpu.memory_space<vmem>>, vector<2048x32xbf16>
    %cst = arith.constant dense<0.000000e+00> : vector<2x32xf32>
    %3 = tpu.matmul %1, %2, %cst {dimension_numbers = #tpu.dot_dimension_numbers<[1], [0], [0], [1], [0, 0, 1, 1], [], []>} : vector<2x2048xbf16>, vector<2048x32xbf16>, vector<2x32xf32> -> vector<2x32xf32>
    %c0_3 = arith.constant 0 : index
    %c0_4 = arith.constant 0 : index
    %4 = vector.load %arg2[%c0_3, %c0_4] : memref<1x32xf32, #tpu.memory_space<vmem>>, vector<1x32xf32>
    %5 = vector.broadcast %4 : vector<1x32xf32> to vector<2x32xf32>
    %6 = arith.addf %3, %5 : vector<2x32xf32>
    %cst_5 = arith.constant 0.000000e+00 : f32
    %7 = vector.broadcast %cst_5 : f32 to vector<2x32xf32>
    %8 = arith.maximumf %6, %7 : vector<2x32xf32>
    %9 = arith.truncf %8 : vector<2x32xf32> to vector<2x32xbf16>
    %c0_6 = arith.constant 0 : index
    %c0_7 = arith.constant 0 : index
    %10 = vector.load %arg3[%c0_6, %c0_7] : memref<32x32xbf16, #tpu.memory_space<vmem>>, vector<32x32xbf16>
    %cst_8 = arith.constant dense<0.000000e+00> : vector<2x32xf32>
    %11 = tpu.matmul %9, %10, %cst_8 {dimension_numbers = #tpu.dot_dimension_numbers<[1], [0], [0], [1], [0, 0, 1, 1], [], []>} : vector<2x32xbf16>, vector<32x32xbf16>, vector<2x32xf32> -> vector<2x32xf32>
    %c0_9 = arith.constant 0 : index
    %c0_10 = arith.constant 0 : index
    %12 = vector.load %arg4[%c0_9, %c0_10] : memref<1x32xf32, #tpu.memory_space<vmem>>, vector<1x32xf32>
    %13 = vector.broadcast %12 : vector<1x32xf32> to vector<2x32xf32>
    %14 = arith.addf %11, %13 : vector<2x32xf32>
    %cst_11 = arith.constant 0.000000e+00 : f32
    %15 = vector.broadcast %cst_11 : f32 to vector<2x32xf32>
    %16 = arith.maximumf %14, %15 : vector<2x32xf32>
    %c0_12 = arith.constant 0 : index
    %c0_13 = arith.constant 0 : index
    %17 = vector.load %arg5[%c0_12, %c0_13] : memref<2x32xf32, #tpu.memory_space<vmem>>, vector<2x32xf32>
    tpu.vector_store %arg5[%c0_12, %c0_13], %16 {strides = array<i32>} : memref<2x32xf32, #tpu.memory_space<vmem>>, vector<2x32xf32>,
    return
  }
}

</mosaic_0001>

<llo_original>
// kernel: box_head_forward.3
$region0: #{box_head_forward.3}
  #allocation0 [shape = 'u32[]', space=smem, size = 0x4, offset = 0x4, fixed_abs, tag = 'smem constant byte address 0x4 - core index']
  #allocation1 [shape = 'u32[144,128]{1,0:T(1,128)}', space=vmem, size = 0x12000, scoped, tag = 'internal scratch']
  %s0 = inlined_call_operand.vmem [shape: f32[2,2048], index: 0, kind: input, shape index: {}]
  %s1 = inlined_call_operand.vmem [shape: bf16[2048,32], index: 1, kind: input, shape index: {}]
  %s2 = inlined_call_operand.vmem [shape: f32[1,32], index: 2, kind: input, shape index: {}]
  %s3 = inlined_call_operand.vmem [shape: bf16[32,32], index: 3, kind: input, shape index: {}]
  %s4 = inlined_call_operand.vmem [shape: f32[1,32], index: 4, kind: input, shape index: {}]
  %s5 = inlined_call_operand.hbm [shape: f32[2,32], index: 5, kind: output, shape index: {}]
  %s6 = sld [smem:[#allocation0]]
  $region30: #{box_head_forward.3} parent=0
    _
  %s8 = ssub.s32 1, %s6
  %s9 = scalar_select 0, %s8, %s6
  $region1: #{box_head_forward.3} parent=0
    #allocation2 [shape = 'u8[1024]{0}', space=vmem, size = 0x400, scoped, tag = 'output window, operand 0, single buffered']
    #allocation3 [shape = 's32[1]{0}', space=sflag, size = 0x4, scoped, tag = 'scoped memory for box_head_forward.3']
    %10 = vsyncpa [#allocation3], 0
    // Predicated region
    $region2: #{box_head_forward.3} parent=1 // pred_check
      _
    $region3: #{box_head_forward.3} parent=1 // pred_check_branch
      %12 = sbr.rel (0) target = $region5
    $region4: #{box_head_forward.3} parent=1 // pred_region
      _
    $region5: #{box_head_forward.3} parent=1 // pred_fallthru
      _
    // Predicated region
    $region6: #{box_head_forward.3} parent=1 // pred_check
      _
    $region7: #{box_head_forward.3} parent=1 // pred_check_branch
      %14 = sbr.rel (0) target = $region9
    $region8: #{box_head_forward.3} parent=1 // pred_region
      _
    $region9: #{box_head_forward.3} parent=1 // pred_fallthru
      _
    // Predicated region
    $region10: #{box_head_forward.3} parent=1 // pred_check
      _
    $region11: #{box_head_forward.3} parent=1 // pred_check_branch
      %16 = sbr.rel (0) target = $region13
    $region12: #{box_head_forward.3} parent=1 // pred_region
      _
    $region13: #{box_head_forward.3} parent=1 // pred_fallthru
      _
    // Predicated region
    $region14: #{box_head_forward.3} parent=1 // pred_check
      _
    $region15: #{box_head_forward.3} parent=1 // pred_check_branch
      %18 = sbr.rel (0) target = $region17
    $region16: #{box_head_forward.3} parent=1 // pred_region
      _
    $region17: #{box_head_forward.3} parent=1 // pred_fallthru
      _
    // Predicated region
    $region18: #{box_head_forward.3} parent=1 // pred_check
      _
    $region19: #{box_head_forward.3} parent=1 // pred_check_branch
      %20 = sbr.rel (0) target = $region21
    $region20: #{box_head_forward.3} parent=1 // pred_region
      _
    $region21: #{box_head_forward.3} parent=1 // pred_fallthru
      _
    %v22 = vld [vmem:[%s0] sm:$0xff]
    %v23 = vld [vmem:[%s0 + $0x8] sm:$0xff]
    %v24 = vld [vmem:[%s0 + $0x10] sm:$0xff]
    %v25 = vld [vmem:[%s0 + $0x18] sm:$0xff]
    %v30 = vcombine.high %v22, %v22
    %v32 = vunpack.c.l.s4 1983009808
    %v33 = vunpack.c.0.s8 %v32
    %v34 = vlaneseq
    %v35 = vshrl.u32 %v34, 7
    %v36 = vsub.s32 %v33, %v35
    %v37 = vrot.slane %v22, %v36
    %v39 = vunpack.c.l.s4 1983009808
    %v40 = vunpack.c.0.s8 %v39
    %v41 = vlaneseq
    %v42 = vshrl.u32 %v41, 7
    %v43 = vsub.s32 %v40, %v42
    %v44 = vrot.slane %v30, %v43
    %v45 = vcombine.high %v37, %v37
    %v46 = vcombine.high %v44, %v44
    %v47 = vcombine.high %v23, %v23
    %v49 = vunpack.c.l.s4 1983009808
    %v50 = vunpack.c.0.s8 %v49
    %v51 = vlaneseq
    %v52 = vshrl.u32 %v51, 7
    %v53 = vsub.s32 %v50, %v52
    %v54 = vrot.slane %v23, %v53
    %v56 = vunpack.c.l.s4 1983009808
    %v57 = vunpack.c.0.s8 %v56
    %v58 = vlaneseq
    %v59 = vshrl.u32 %v58, 7
    %v60 = vsub.s32 %v57, %v59
    %v61 = vrot.slane %v47, %v60
    %v62 = vcombine.high %v54, %v54
    %v63 = vcombine.high %v61, %v61
    %v64 = vcombine.high %v24, %v24
    %v66 = vunpack.c.l.s4 1983009808
    %v67 = vunpack.c.0.s8 %v66
    %v68 = vlaneseq
    %v69 = vshrl.u32 %v68, 7
    %v70 = vsub.s32 %v67, %v69
    %v71 = vrot.slane %v24, %v70
    %v73 = vunpack.c.l.s4 1983009808
    %v74 = vunpack.c.0.s8 %v73
    %v75 = vlaneseq
    %v76 = vshrl.u32 %v75, 7
    %v77 = vsub.s32 %v74, %v76
    %v78 = vrot.slane %v64, %v77
    %v79 = vcombine.high %v71, %v71
    %v80 = vcombine.high %v78, %v78
    %v81 = vcombine.high %v25, %v25
    %v83 = vunpack.c.l.s4 1983009808
    %v84 = vunpack.c.0.s8 %v83
    %v85 = vlaneseq
    %v86 = vshrl.u32 %v85, 7
    %v87 = vsub.s32 %v84, %v86
    %v88 = vrot.slane %v25, %v87
    %v90 = vunpack.c.l.s4 1983009808
    %v91 = vunpack.c.0.s8 %v90
    %v92 = vlaneseq
    %v93 = vshrl.u32 %v92, 7
    %v94 = vsub.s32 %v91, %v93
    %v95 = vrot.slane %v81, %v94
    %v96 = vcombine.high %v88, %v88
    %v97 = vcombine.high %v95, %v95
    %v114 = vpack.c.bf16 %v37, %v37
    %v115 = vpack.c.bf16 %v45, %v45
    %v116 = vpack.c.bf16 %v44, %v44
    %v117 = vpack.c.bf16 %v46, %v46
    %v118 = vpack.c.bf16 %v54, %v54
    %v119 = vpack.c.bf16 %v62, %v62
    %v120 = vpack.c.bf16 %v61, %v61
    %v121 = vpack.c.bf16 %v63, %v63
    %v122 = vpack.c.bf16 %v71, %v71
    %v123 = vpack.c.bf16 %v79, %v79
    %v124 = vpack.c.bf16 %v78, %v78
    %v125 = vpack.c.bf16 %v80, %v80
    %v126 = vpack.c.bf16 %v88, %v88
    %v127 = vpack.c.bf16 %v96, %v96
    %v128 = vpack.c.bf16 %v95, %v95
    %v129 = vpack.c.bf16 %v97, %v97
    %v130 = vld [vmem:[%s1] sm:$0xf]
    %v131 = vld [vmem:[%s1 + $0x4] sm:$0xf]
    %v132 = vld [vmem:[%s1 + $0x8] sm:$0xf]
    %v133 = vld [vmem:[%s1 + $0xc] sm:$0xf]
    %v134 = vld [vmem:[%s1 + $0x10] sm:$0xf]
    %v135 = vld [vmem:[%s1 + $0x14] sm:$0xf]
    %v136 = vld [vmem:[%s1 + $0x18] sm:$0xf]
    %v137 = vld [vmem:[%s1 + $0x1c] sm:$0xf]
    %v138 = vld [vmem:[%s1 + $0x20] sm:$0xf]
    %v139 = vld [vmem:[%s1 + $0x24] sm:$0xf]
    %v140 = vld [vmem:[%s1 + $0x28] sm:$0xf]
    %v141 = vld [vmem:[%s1 + $0x2c] sm:$0xf]
    %v142 = vld [vmem:[%s1 + $0x30] sm:$0xf]
    %v143 = vld [vmem:[%s1 + $0x34] sm:$0xf]
    %v144 = vld [vmem:[%s1 + $0x38] sm:$0xf]
    %v145 = vld [vmem:[%s1 + $0x3c] sm:$0xf]
    %v146 = vld [vmem:[%s1 + $0x40] sm:$0xf]
    %v147 = vld [vmem:[%s1 + $0x44] sm:$0xf]
    %v148 = vld [vmem:[%s1 + $0x48] sm:$0xf]
    %v149 = vld [vmem:[%s1 + $0x4c] sm:$0xf]
    %v150 = vld [vmem:[%s1 + $0x50] sm:$0xf]
    %v151 = vld [vmem:[%s1 + $0x54] sm:$0xf]
    %v152 = vld [vmem:[%s1 + $0x58] sm:$0xf]
    %v153 = vld [vmem:[%s1 + $0x5c] sm:$0xf]
    %v154 = vld [vmem:[%s1 + $0x60] sm:$0xf]
    %v155 = vld [vmem:[%s1 + $0x64] sm:$0xf]
    %v156 = vld [vmem:[%s1 + $0x68] sm:$0xf]
    %v157 = vld [vmem:[%s1 + $0x6c] sm:$0xf]
    %v158 = vld [vmem:[%s1 + $0x70] sm:$0xf]
    %v159 = vld [vmem:[%s1 + $0x74] sm:$0xf]
    %v160 = vld [vmem:[%s1 + $0x78] sm:$0xf]
    %v161 = vld [vmem:[%s1 + $0x7c] sm:$0xf]
    %v162 = vld [vmem:[%s1 + $0x80] sm:$0xf]
    %v163 = vld [vmem:[%s1 + $0x84] sm:$0xf]
    %v164 = vld [vmem:[%s1 + $0x88] sm:$0xf]
    %v165 = vld [vmem:[%s1 + $0x8c] sm:$0xf]
    %v166 = vld [vmem:[%s1 + $0x90] sm:$0xf]
    %v167 = vld [vmem:[%s1 + $0x94] sm:$0xf]
    %v168 = vld [vmem:[%s1 + $0x98] sm:$0xf]
    %v169 = vld [vmem:[%s1 + $0x9c] sm:$0xf]
    %v170 = vld [vmem:[%s1 + $0xa0] sm:$0xf]
    %v171 = vld [vmem:[%s1 + $0xa4] sm:$0xf]
    %v172 = vld [vmem:[%s1 + $0xa8] sm:$0xf]
    %v173 = vld [vmem:[%s1 + $0xac] sm:$0xf]
    %v174 = vld [vmem:[%s1 + $0xb0] sm:$0xf]
    %v175 = vld [vmem:[%s1 + $0xb4] sm:$0xf]
    %v176 = vld [vmem:[%s1 + $0xb8] sm:$0xf]
    %v177 = vld [vmem:[%s1 + $0xbc] sm:$0xf]
    %v178 = vld [vmem:[%s1 + $0xc0] sm:$0xf]
    %v179 = vld [vmem:[%s1 + $0xc4] sm:$0xf]
    %v180 = vld [vmem:[%s1 + $0xc8] sm:$0xf]
    %v181 = vld [vmem:[%s1 + $0xcc] sm:$0xf]
    %v182 = vld [vmem:[%s1 + $0xd0] sm:$0xf]
    %v183 = vld [vmem:[%s1 + $0xd4] sm:$0xf]
    %v184 = vld [vmem:[%s1 + $0xd8] sm:$0xf]
    %v185 = vld [vmem:[%s1 + $0xdc] sm:$0xf]
    %v186 = vld [vmem:[%s1 + $0xe0] sm:$0xf]
    %v187 = vld [vmem:[%s1 + $0xe4] sm:$0xf]
    %v188 = vld [vmem:[%s1 + $0xe8] sm:$0xf]
    %v189 = vld [vmem:[%s1 + $0xec] sm:$0xf]
    %v190 = vld [vmem:[%s1 + $0xf0] sm:$0xf]
    %v191 = vld [vmem:[%s1 + $0xf4] sm:$0xf]
    %v192 = vld [vmem:[%s1 + $0xf8] sm:$0xf]
    %v193 = vld [vmem:[%s1 + $0xfc] sm:$0xf]
    %v194 = vld [vmem:[%s1 + $0x100] sm:$0xf]
    %v195 = vld [vmem:[%s1 + $0x104] sm:$0xf]
    %v196 = vld [vmem:[%s1 + $0x108] sm:$0xf]
    %v197 = vld [vmem:[%s1 + $0x10c] sm:$0xf]
    %v198 = vld [vmem:[%s1 + $0x110] sm:$0xf]
    %v199 = vld [vmem:[%s1 + $0x114] sm:$0xf]
    %v200 = vld [vmem:[%s1 + $0x118] sm:$0xf]
    %v201 = vld [vmem:[%s1 + $0x11c] sm:$0xf]
    %v202 = vld [vmem:[%s1 + $0x120] sm:$0xf]
    %v203 = vld [vmem:[%s1 + $0x124] sm:$0xf]
    %v204 = vld [vmem:[%s1 + $0x128] sm:$0xf]
    %v205 = vld [vmem:[%s1 + $0x12c] sm:$0xf]
    %v206 = vld [vmem:[%s1 + $0x130] sm:$0xf]
    %v207 = vld [vmem:[%s1 + $0x134] sm:$0xf]
    %v208 = vld [vmem:[%s1 + $0x138] sm:$0xf]
    %v209 = vld [vmem:[%s1 + $0x13c] sm:$0xf]
    %v210 = vld [vmem:[%s1 + $0x140] sm:$0xf]
    %v211 = vld [vmem:[%s1 + $0x144] sm:$0xf]
    %v212 = vld [vmem:[%s1 + $0x148] sm:$0xf]
    %v213 = vld [vmem:[%s1 + $0x14c] sm:$0xf]
    %v214 = vld [vmem:[%s1 + $0x150] sm:$0xf]
    %v215 = vld [vmem:[%s1 + $0x154] sm:$0xf]
    %v216 = vld [vmem:[%s1 + $0x158] sm:$0xf]
    %v217 = vld [vmem:[%s1 + $0x15c] sm:$0xf]
    %v218 = vld [vmem:[%s1 + $0x160] sm:$0xf]
    %v219 = vld [vmem:[%s1 + $0x164] sm:$0xf]
    %v220 = vld [vmem:[%s1 + $0x168] sm:$0xf]
    %v221 = vld [vmem:[%s1 + $0x16c] sm:$0xf]
    %v222 = vld [vmem:[%s1 + $0x170] sm:$0xf]
    %v223 = vld [vmem:[%s1 + $0x174] sm:$0xf]
    %v224 = vld [vmem:[%s1 + $0x178] sm:$0xf]
    %v225 = vld [vmem:[%s1 + $0x17c] sm:$0xf]
    %v226 = vld [vmem:[%s1 + $0x180] sm:$0xf]
    %v227 = vld [vmem:[%s1 + $0x184] sm:$0xf]
    %v228 = vld [vmem:[%s1 + $0x188] sm:$0xf]
    %v229 = vld [vmem:[%s1 + $0x18c] sm:$0xf]
    %v230 = vld [vmem:[%s1 + $0x190] sm:$0xf]
    %v231 = vld [vmem:[%s1 + $0x194] sm:$0xf]
    %v232 = vld [vmem:[%s1 + $0x198] sm:$0xf]
    %v233 = vld [vmem:[%s1 + $0x19c] sm:$0xf]
    %v234 = vld [vmem:[%s1 + $0x1a0] sm:$0xf]
    %v235 = vld [vmem:[%s1 + $0x1a4] sm:$0xf]
    %v236 = vld [vmem:[%s1 + $0x1a8] sm:$0xf]
    %v237 = vld [vmem:[%s1 + $0x1ac] sm:$0xf]
    %v238 = vld [vmem:[%s1 + $0x1b0] sm:$0xf]
    %v239 = vld [vmem:[%s1 + $0x1b4] sm:$0xf]
    %v240 = vld [vmem:[%s1 + $0x1b8] sm:$0xf]
    %v241 = vld [vmem:[%s1 + $0x1bc] sm:$0xf]
    %v242 = vld [vmem:[%s1 + $0x1c0] sm:$0xf]
    %v243 = vld [vmem:[%s1 + $0x1c4] sm:$0xf]
    %v244 = vld [vmem:[%s1 + $0x1c8] sm:$0xf]
    %v245 = vld [vmem:[%s1 + $0x1cc] sm:$0xf]
    %v246 = vld [vmem:[%s1 + $0x1d0] sm:$0xf]
    %v247 = vld [vmem:[%s1 + $0x1d4] sm:$0xf]
    %v248 = vld [vmem:[%s1 + $0x1d8] sm:$0xf]
    %v249 = vld [vmem:[%s1 + $0x1dc] sm:$0xf]
    %v250 = vld [vmem:[%s1 + $0x1e0] sm:$0xf]
    %v251 = vld [vmem:[%s1 + $0x1e4] sm:$0xf]
    %v252 = vld [vmem:[%s1 + $0x1e8] sm:$0xf]
    %v253 = vld [vmem:[%s1 + $0x1ec] sm:$0xf]
    %v254 = vld [vmem:[%s1 + $0x1f0] sm:$0xf]
    %v255 = vld [vmem:[%s1 + $0x1f4] sm:$0xf]
    %v256 = vld [vmem:[%s1 + $0x1f8] sm:$0xf]
    %v257 = vld [vmem:[%s1 + $0x1fc] sm:$0xf]
    %v258 = vld [vmem:[%s1 + $0x200] sm:$0xf]
    %v259 = vld [vmem:[%s1 + $0x204] sm:$0xf]
    %v260 = vld [vmem:[%s1 + $0x208] sm:$0xf]
    %v261 = vld [vmem:[%s1 + $0x20c] sm:$0xf]
    %v262 = vld [vmem:[%s1 + $0x210] sm:$0xf]
    %v263 = vld [vmem:[%s1 + $0x214] sm:$0xf]
    %v264 = vld [vmem:[%s1 + $0x218] sm:$0xf]
    %v265 = vld [vmem:[%s1 + $0x21c] sm:$0xf]
    %v266 = vld [vmem:[%s1 + $0x220] sm:$0xf]
    %v267 = vld [vmem:[%s1 + $0x224] sm:$0xf]
    %v268 = vld [vmem:[%s1 + $0x228] sm:$0xf]
    %v269 = vld [vmem:[%s1 + $0x22c] sm:$0xf]
    %v270 = vld [vmem:[%s1 + $0x230] sm:$0xf]
    %v271 = vld [vmem:[%s1 + $0x234] sm:$0xf]
    %v272 = vld [vmem:[%s1 + $0x238] sm:$0xf]
    %v273 = vld [vmem:[%s1 + $0x23c] sm:$0xf]
    %v274 = vld [vmem:[%s1 + $0x240] sm:$0xf]
    %v275 = vld [vmem:[%s1 + $0x244] sm:$0xf]
    %v276 = vld [vmem:[%s1 + $0x248] sm:$0xf]
    %v277 = vld [vmem:[%s1 + $0x24c] sm:$0xf]
    %v278 = vld [vmem:[%s1 + $0x250] sm:$0xf]
    %v279 = vld [vmem:[%s1 + $0x254] sm:$0xf]
    %v280 = vld [vmem:[%s1 + $0x258] sm:$0xf]
    %v281 = vld [vmem:[%s1 + $0x25c] sm:$0xf]
    %v282 = vld [vmem:[%s1 + $0x260] sm:$0xf]
    %v283 = vld [vmem:[%s1 + $0x264] sm:$0xf]
    %v284 = vld [vmem:[%s1 + $0x268] sm:$0xf]
    %v285 = vld [vmem:[%s1 + $0x26c] sm:$0xf]
    %v286 = vld [vmem:[%s1 + $0x270] sm:$0xf]
    %v287 = vld [vmem:[%s1 + $0x274] sm:$0xf]
    %v288 = vld [vmem:[%s1 + $0x278] sm:$0xf]
    %v289 = vld [vmem:[%s1 + $0x27c] sm:$0xf]
    %v290 = vld [vmem:[%s1 + $0x280] sm:$0xf]
    %v291 = vld [vmem:[%s1 + $0x284] sm:$0xf]
    %v292 = vld [vmem:[%s1 + $0x288] sm:$0xf]
    %v293 = vld [vmem:[%s1 + $0x28c] sm:$0xf]
    %v294 = vld [vmem:[%s1 + $0x290] sm:$0xf]
    %v295 = vld [vmem:[%s1 + $0x294] sm:$0xf]
    %v296 = vld [vmem:[%s1 + $0x298] sm:$0xf]
    %v297 = vld [vmem:[%s1 + $0x29c] sm:$0xf]
    %v298 = vld [vmem:[%s1 + $0x2a0] sm:$0xf]
    %v299 = vld [vmem:[%s1 + $0x2a4] sm:$0xf]
    %v300 = vld [vmem:[%s1 + $0x2a8] sm:$0xf]
    %v301 = vld [vmem:[%s1 + $0x2ac] sm:$0xf]
    %v302 = vld [vmem:[%s1 + $0x2b0] sm:$0xf]
    %v303 = vld [vmem:[%s1 + $0x2b4] sm:$0xf]
    %v304 = vld [vmem:[%s1 + $0x2b8] sm:$0xf]
    %v305 = vld [vmem:[%s1 + $0x2bc] sm:$0xf]
    %v306 = vld [vmem:[%s1 + $0x2c0] sm:$0xf]
    %v307 = vld [vmem:[%s1 + $0x2c4] sm:$0xf]
    %v308 = vld [vmem:[%s1 + $0x2c8] sm:$0xf]
    %v309 = vld [vmem:[%s1 + $0x2cc] sm:$0xf]
    %v310 = vld [vmem:[%s1 + $0x2d0] sm:$0xf]
    %v311 = vld [vmem:[%s1 + $0x2d4] sm:$0xf]
    %v312 = vld [vmem:[%s1 + $0x2d8] sm:$0xf]
    %v313 = vld [vmem:[%s1 + $0x2dc] sm:$0xf]
    %v314 = vld [vmem:[%s1 + $0x2e0] sm:$0xf]
    %v315 = vld [vmem:[%s1 + $0x2e4] sm:$0xf]
    %v316 = vld [vmem:[%s1 + $0x2e8] sm:$0xf]
    %v317 = vld [vmem:[%s1 + $0x2ec] sm:$0xf]
    %v318 = vld [vmem:[%s1 + $0x2f0] sm:$0xf]
    %v319 = vld [vmem:[%s1 + $0x2f4] sm:$0xf]
    %v320 = vld [vmem:[%s1 + $0x2f8] sm:$0xf]
    %v321 = vld [vmem:[%s1 + $0x2fc] sm:$0xf]
    %v322 = vld [vmem:[%s1 + $0x300] sm:$0xf]
    %v323 = vld [vmem:[%s1 + $0x304] sm:$0xf]
    %v324 = vld [vmem:[%s1 + $0x308] sm:$0xf]
    %v325 = vld [vmem:[%s1 + $0x30c] sm:$0xf]
    %v326 = vld [vmem:[%s1 + $0x310] sm:$0xf]
    %v327 = vld [vmem:[%s1 + $0x314] sm:$0xf]
    %v328 = vld [vmem:[%s1 + $0x318] sm:$0xf]
    %v329 = vld [vmem:[%s1 + $0x31c] sm:$0xf]
    %v330 = vld [vmem:[%s1 + $0x320] sm:$0xf]
    %v331 = vld [vmem:[%s1 + $0x324] sm:$0xf]
    %v332 = vld [vmem:[%s1 + $0x328] sm:$0xf]
    %v333 = vld [vmem:[%s1 + $0x32c] sm:$0xf]
    %v334 = vld [vmem:[%s1 + $0x330] sm:$0xf]
    %v335 = vld [vmem:[%s1 + $0x334] sm:$0xf]
    %v336 = vld [vmem:[%s1 + $0x338] sm:$0xf]
    %v337 = vld [vmem:[%s1 + $0x33c] sm:$0xf]
    %v338 = vld [vmem:[%s1 + $0x340] sm:$0xf]
    %v339 = vld [vmem:[%s1 + $0x344] sm:$0xf]
    %v340 = vld [vmem:[%s1 + $0x348] sm:$0xf]
    %v341 = vld [vmem:[%s1 + $0x34c] sm:$0xf]
    %v342 = vld [vmem:[%s1 + $0x350] sm:$0xf]
    %v343 = vld [vmem:[%s1 + $0x354] sm:$0xf]
    %v344 = vld [vmem:[%s1 + $0x358] sm:$0xf]
    %v345 = vld [vmem:[%s1 + $0x35c] sm:$0xf]
    %v346 = vld [vmem:[%s1 + $0x360] sm:$0xf]
    %v347 = vld [vmem:[%s1 + $0x364] sm:$0xf]
    %v348 = vld [vmem:[%s1 + $0x368] sm:$0xf]
    %v349 = vld [vmem:[%s1 + $0x36c] sm:$0xf]
    %v350 = vld [vmem:[%s1 + $0x370] sm:$0xf]
    %v351 = vld [vmem:[%s1 + $0x374] sm:$0xf]
    %v352 = vld [vmem:[%s1 + $0x378] sm:$0xf]
    %v353 = vld [vmem:[%s1 + $0x37c] sm:$0xf]
    %v354 = vld [vmem:[%s1 + $0x380] sm:$0xf]
    %v355 = vld [vmem:[%s1 + $0x384] sm:$0xf]
    %v356 = vld [vmem:[%s1 + $0x388] sm:$0xf]
    %v357 = vld [vmem:[%s1 + $0x38c] sm:$0xf]
    %v358 = vld [vmem:[%s1 + $0x390] sm:$0xf]
    %v359 = vld [vmem:[%s1 + $0x394] sm:$0xf]
    %v360 = vld [vmem:[%s1 + $0x398] sm:$0xf]
    %v361 = vld [vmem:[%s1 + $0x39c] sm:$0xf]
    %v362 = vld [vmem:[%s1 + $0x3a0] sm:$0xf]
    %v363 = vld [vmem:[%s1 + $0x3a4] sm:$0xf]
    %v364 = vld [vmem:[%s1 + $0x3a8] sm:$0xf]
    %v365 = vld [vmem:[%s1 + $0x3ac] sm:$0xf]
    %v366 = vld [vmem:[%s1 + $0x3b0] sm:$0xf]
    %v367 = vld [vmem:[%s1 + $0x3b4] sm:$0xf]
    %v368 = vld [vmem:[%s1 + $0x3b8] sm:$0xf]
    %v369 = vld [vmem:[%s1 + $0x3bc] sm:$0xf]
    %v370 = vld [vmem:[%s1 + $0x3c0] sm:$0xf]
    %v371 = vld [vmem:[%s1 + $0x3c4] sm:$0xf]
    %v372 = vld [vmem:[%s1 + $0x3c8] sm:$0xf]
    %v373 = vld [vmem:[%s1 + $0x3cc] sm:$0xf]
    %v374 = vld [vmem:[%s1 + $0x3d0] sm:$0xf]
    %v375 = vld [vmem:[%s1 + $0x3d4] sm:$0xf]
    %v376 = vld [vmem:[%s1 + $0x3d8] sm:$0xf]
    %v377 = vld [vmem:[%s1 + $0x3dc] sm:$0xf]
    %v378 = vld [vmem:[%s1 + $0x3e0] sm:$0xf]
    %v379 = vld [vmem:[%s1 + $0x3e4] sm:$0xf]
    %v380 = vld [vmem:[%s1 + $0x3e8] sm:$0xf]
    %v381 = vld [vmem:[%s1 + $0x3ec] sm:$0xf]
    %v382 = vld [vmem:[%s1 + $0x3f0] sm:$0xf]
    %v383 = vld [vmem:[%s1 + $0x3f4] sm:$0xf]
    %v384 = vld [vmem:[%s1 + $0x3f8] sm:$0xf]
    %v385 = vld [vmem:[%s1 + $0x3fc] sm:$0xf]
    %v386 = vld [vmem:[%s2] sm:$0x1]
    %v388 = vlaneseq
    %v389 = vshrl.u32 %v388, 7
    %v390 = vsub.s32 0, %v389
    %v391 = vrot.slane %v386, %v390
    %v649 = vunpack.c.l.b16 %v130
    %v650 = vunpack.c.l.b16 %v131
    %v651 = vunpack.c.l.b16 %v132
    %v652 = vunpack.c.l.b16 %v133
    %v653 = vunpack.c.l.b16 %v134
    %v654 = vunpack.c.l.b16 %v135
    %v655 = vunpack.c.l.b16 %v136
    %v656 = vunpack.c.l.b16 %v137
    %v657 = vunpack.c.l.b16 %v138
    %v658 = vunpack.c.l.b16 %v139
    %v659 = vunpack.c.l.b16 %v140
    %v660 = vunpack.c.l.b16 %v141
    %v661 = vunpack.c.l.b16 %v142
    %v662 = vunpack.c.l.b16 %v143
    %v663 = vunpack.c.l.b16 %v144
    %v664 = vunpack.c.l.b16 %v145
    %v665 = vunpack.c.l.b16 %v146
    %v666 = vunpack.c.l.b16 %v147
    %v667 = vunpack.c.l.b16 %v148
    %v668 = vunpack.c.l.b16 %v149
    %v669 = vunpack.c.l.b16 %v150
    %v670 = vunpack.c.l.b16 %v151
    %v671 = vunpack.c.l.b16 %v152
    %v672 = vunpack.c.l.b16 %v153
    %v673 = vunpack.c.l.b16 %v154
    %v674 = vunpack.c.l.b16 %v155
    %v675 = vunpack.c.l.b16 %v156
    %v676 = vunpack.c.l.b16 %v157
    %v677 = vunpack.c.l.b16 %v158
    %v678 = vunpack.c.l.b16 %v159
    %v679 = vunpack.c.l.b16 %v160
    %v680 = vunpack.c.l.b16 %v161
    %v681 = vunpack.c.l.b16 %v162
    %v682 = vunpack.c.l.b16 %v163
    %v683 = vunpack.c.l.b16 %v164
    %v684 = vunpack.c.l.b16 %v165
    %v685 = vunpack.c.l.b16 %v166
    %v686 = vunpack.c.l.b16 %v167
    %v687 = vunpack.c.l.b16 %v168
    %v688 = vunpack.c.l.b16 %v169
    %v689 = vunpack.c.l.b16 %v170
    %v690 = vunpack.c.l.b16 %v171
    %v691 = vunpack.c.l.b16 %v172
    %v692 = vunpack.c.l.b16 %v173
    %v693 = vunpack.c.l.b16 %v174
    %v694 = vunpack.c.l.b16 %v175
    %v695 = vunpack.c.l.b16 %v176
    %v696 = vunpack.c.l.b16 %v177
    %v697 = vunpack.c.l.b16 %v178
    %v698 = vunpack.c.l.b16 %v179
    %v699 = vunpack.c.l.b16 %v180
    %v700 = vunpack.c.l.b16 %v181
    %v701 = vunpack.c.l.b16 %v182
    %v702 = vunpack.c.l.b16 %v183
    %v703 = vunpack.c.l.b16 %v184
    %v704 = vunpack.c.l.b16 %v185
    %v705 = vunpack.c.l.b16 %v186
    %v706 = vunpack.c.l.b16 %v187
    %v707 = vunpack.c.l.b16 %v188
    %v708 = vunpack.c.l.b16 %v189
    %v709 = vunpack.c.l.b16 %v190
    %v710 = vunpack.c.l.b16 %v191
    %v711 = vunpack.c.l.b16 %v192
    %v712 = vunpack.c.l.b16 %v193
    %v713 = vunpack.c.l.b16 %v194
    %v714 = vunpack.c.l.b16 %v195
    %v715 = vunpack.c.l.b16 %v196
    %v716 = vunpack.c.l.b16 %v197
    %v717 = vunpack.c.l.b16 %v198
    %v718 = vunpack.c.l.b16 %v199
    %v719 = vunpack.c.l.b16 %v200
    %v720 = vunpack.c.l.b16 %v201
    %v721 = vunpack.c.l.b16 %v202
    %v722 = vunpack.c.l.b16 %v203
    %v723 = vunpack.c.l.b16 %v204
    %v724 = vunpack.c.l.b16 %v205
    %v725 = vunpack.c.l.b16 %v206
    %v726 = vunpack.c.l.b16 %v207
    %v727 = vunpack.c.l.b16 %v208
    %v728 = vunpack.c.l.b16 %v209
    %v729 = vunpack.c.l.b16 %v210
    %v730 = vunpack.c.l.b16 %v211
    %v731 = vunpack.c.l.b16 %v212
    %v732 = vunpack.c.l.b16 %v213
    %v733 = vunpack.c.l.b16 %v214
    %v734 = vunpack.c.l.b16 %v215
    %v735 = vunpack.c.l.b16 %v216
    %v736 = vunpack.c.l.b16 %v217
    %v737 = vunpack.c.l.b16 %v218
    %v738 = vunpack.c.l.b16 %v219
    %v739 = vunpack.c.l.b16 %v220
    %v740 = vunpack.c.l.b16 %v221
    %v741 = vunpack.c.l.b16 %v222
    %v742 = vunpack.c.l.b16 %v223
    %v743 = vunpack.c.l.b16 %v224
    %v744 = vunpack.c.l.b16 %v225
    %v745 = vunpack.c.l.b16 %v226
    %v746 = vunpack.c.l.b16 %v227
    %v747 = vunpack.c.l.b16 %v228
    %v748 = vunpack.c.l.b16 %v229
    %v749 = vunpack.c.l.b16 %v230
    %v750 = vunpack.c.l.b16 %v231
    %v751 = vunpack.c.l.b16 %v232
    %v752 = vunpack.c.l.b16 %v233
    %v753 = vunpack.c.l.b16 %v234
    %v754 = vunpack.c.l.b16 %v235
    %v755 = vunpack.c.l.b16 %v236
    %v756 = vunpack.c.l.b16 %v237
    %v757 = vunpack.c.l.b16 %v238
    %v758 = vunpack.c.l.b16 %v239
    %v759 = vunpack.c.l.b16 %v240
    %v760 = vunpack.c.l.b16 %v241
    %v761 = vunpack.c.l.b16 %v242
    %v762 = vunpack.c.l.b16 %v243
    %v763 = vunpack.c.l.b16 %v244
    %v764 = vunpack.c.l.b16 %v245
    %v765 = vunpack.c.l.b16 %v246
    %v766 = vunpack.c.l.b16 %v247
    %v767 = vunpack.c.l.b16 %v248
    %v768 = vunpack.c.l.b16 %v249
    %v769 = vunpack.c.l.b16 %v250
    %v770 = vunpack.c.l.b16 %v251
    %v771 = vunpack.c.l.b16 %v252
    %v772 = vunpack.c.l.b16 %v253
    %v773 = vunpack.c.l.b16 %v254
    %v774 = vunpack.c.l.b16 %v255
    %v775 = vunpack.c.l.b16 %v256
    %v776 = vunpack.c.l.b16 %v257
    %v777 = vunpack.c.l.b16 %v258
    %v778 = vunpack.c.l.b16 %v259
    %v779 = vunpack.c.l.b16 %v260
    %v780 = vunpack.c.l.b16 %v261
    %v781 = vunpack.c.l.b16 %v262
    %v782 = vunpack.c.l.b16 %v263
    %v783 = vunpack.c.l.b16 %v264
    %v784 = vunpack.c.l.b16 %v265
    %v785 = vunpack.c.l.b16 %v266
    %v786 = vunpack.c.l.b16 %v267
    %v787 = vunpack.c.l.b16 %v268
    %v788 = vunpack.c.l.b16 %v269
    %v789 = vunpack.c.l.b16 %v270
    %v790 = vunpack.c.l.b16 %v271
    %v791 = vunpack.c.l.b16 %v272
    %v792 = vunpack.c.l.b16 %v273
    %v793 = vunpack.c.l.b16 %v274
    %v794 = vunpack.c.l.b16 %v275
    %v795 = vunpack.c.l.b16 %v276
    %v796 = vunpack.c.l.b16 %v277
    %v797 = vunpack.c.l.b16 %v278
    %v798 = vunpack.c.l.b16 %v279
    %v799 = vunpack.c.l.b16 %v280
    %v800 = vunpack.c.l.b16 %v281
    %v801 = vunpack.c.l.b16 %v282
    %v802 = vunpack.c.l.b16 %v283
    %v803 = vunpack.c.l.b16 %v284
    %v804 = vunpack.c.l.b16 %v285
    %v805 = vunpack.c.l.b16 %v286
    %v806 = vunpack.c.l.b16 %v287
    %v807 = vunpack.c.l.b16 %v288
    %v808 = vunpack.c.l.b16 %v289
    %v809 = vunpack.c.l.b16 %v290
    %v810 = vunpack.c.l.b16 %v291
    %v811 = vunpack.c.l.b16 %v292
    %v812 = vunpack.c.l.b16 %v293
    %v813 = vunpack.c.l.b16 %v294
    %v814 = vunpack.c.l.b16 %v295
    %v815 = vunpack.c.l.b16 %v296
    %v816 = vunpack.c.l.b16 %v297
    %v817 = vunpack.c.l.b16 %v298
    %v818 = vunpack.c.l.b16 %v299
    %v819 = vunpack.c.l.b16 %v300
    %v820 = vunpack.c.l.b16 %v301
    %v821 = vunpack.c.l.b16 %v302
    %v822 = vunpack.c.l.b16 %v303
    %v823 = vunpack.c.l.b16 %v304
    %v824 = vunpack.c.l.b16 %v305
    %v825 = vunpack.c.l.b16 %v306
    %v826 = vunpack.c.l.b16 %v307
    %v827 = vunpack.c.l.b16 %v308
    %v828 = vunpack.c.l.b16 %v309
    %v829 = vunpack.c.l.b16 %v310
    %v830 = vunpack.c.l.b16 %v311
    %v831 = vunpack.c.l.b16 %v312
    %v832 = vunpack.c.l.b16 %v313
    %v833 = vunpack.c.l.b16 %v314
    %v834 = vunpack.c.l.b16 %v315
    %v835 = vunpack.c.l.b16 %v316
    %v836 = vunpack.c.l.b16 %v317
    %v837 = vunpack.c.l.b16 %v318
    %v838 = vunpack.c.l.b16 %v319
    %v839 = vunpack.c.l.b16 %v320
    %v840 = vunpack.c.l.b16 %v321
    %v841 = vunpack.c.l.b16 %v322
    %v842 = vunpack.c.l.b16 %v323
    %v843 = vunpack.c.l.b16 %v324
    %v844 = vunpack.c.l.b16 %v325
    %v845 = vunpack.c.l.b16 %v326
    %v846 = vunpack.c.l.b16 %v327
    %v847 = vunpack.c.l.b16 %v328
    %v848 = vunpack.c.l.b16 %v329
    %v849 = vunpack.c.l.b16 %v330
    %v850 = vunpack.c.l.b16 %v331
    %v851 = vunpack.c.l.b16 %v332
    %v852 = vunpack.c.l.b16 %v333
    %v853 = vunpack.c.l.b16 %v334
    %v854 = vunpack.c.l.b16 %v335
    %v855 = vunpack.c.l.b16 %v336
    %v856 = vunpack.c.l.b16 %v337
    %v857 = vunpack.c.l.b16 %v338
    %v858 = vunpack.c.l.b16 %v339
    %v859 = vunpack.c.l.b16 %v340
    %v860 = vunpack.c.l.b16 %v341
    %v861 = vunpack.c.l.b16 %v342
    %v862 = vunpack.c.l.b16 %v343
    %v863 = vunpack.c.l.b16 %v344
    %v864 = vunpack.c.l.b16 %v345
    %v865 = vunpack.c.l.b16 %v346
    %v866 = vunpack.c.l.b16 %v347
    %v867 = vunpack.c.l.b16 %v348
    %v868 = vunpack.c.l.b16 %v349
    %v869 = vunpack.c.l.b16 %v350
    %v870 = vunpack.c.l.b16 %v351
    %v871 = vunpack.c.l.b16 %v352
    %v872 = vunpack.c.l.b16 %v353
    %v873 = vunpack.c.l.b16 %v354
    %v874 = vunpack.c.l.b16 %v355
    %v875 = vunpack.c.l.b16 %v356
    %v876 = vunpack.c.l.b16 %v357
    %v877 = vunpack.c.l.b16 %v358
    %v878 = vunpack.c.l.b16 %v359
    %v879 = vunpack.c.l.b16 %v360
    %v880 = vunpack.c.l.b16 %v361
    %v881 = vunpack.c.l.b16 %v362
    %v882 = vunpack.c.l.b16 %v363
    %v883 = vunpack.c.l.b16 %v364
    %v884 = vunpack.c.l.b16 %v365
    %v885 = vunpack.c.l.b16 %v366
    %v886 = vunpack.c.l.b16 %v367
    %v887 = vunpack.c.l.b16 %v368
    %v888 = vunpack.c.l.b16 %v369
    %v889 = vunpack.c.l.b16 %v370
    %v890 = vunpack.c.l.b16 %v371
    %v891 = vunpack.c.l.b16 %v372
    %v892 = vunpack.c.l.b16 %v373
    %v893 = vunpack.c.l.b16 %v374
    %v894 = vunpack.c.l.b16 %v375
    %v895 = vunpack.c.l.b16 %v376
    %v896 = vunpack.c.l.b16 %v377
    %v897 = vunpack.c.l.b16 %v378
    %v898 = vunpack.c.l.b16 %v379
    %v899 = vunpack.c.l.b16 %v380
    %v900 = vunpack.c.l.b16 %v381
    %v901 = vunpack.c.l.b16 %v382
    %v902 = vunpack.c.l.b16 %v383
    %v903 = vunpack.c.l.b16 %v384
    %v904 = vunpack.c.l.b16 %v385
    %v905 = vpack.c.b16 %v650, %v649
    %v906 = vpack.c.b16 %v652, %v651
    %v907 = vpack.c.b16 %v654, %v653
    %v908 = vpack.c.b16 %v656, %v655
    %v909 = vpack.c.b16 %v658, %v657
    %v910 = vpack.c.b16 %v660, %v659
    %v911 = vpack.c.b16 %v662, %v661
    %v912 = vpack.c.b16 %v664, %v663
    %v913 = vpack.c.b16 %v666, %v665
    %v914 = vpack.c.b16 %v668, %v667
    %v915 = vpack.c.b16 %v670, %v669
    %v916 = vpack.c.b16 %v672, %v671
    %v917 = vpack.c.b16 %v674, %v673
    %v918 = vpack.c.b16 %v676, %v675
    %v919 = vpack.c.b16 %v678, %v677
    %v920 = vpack.c.b16 %v680, %v679
    %v921 = vpack.c.b16 %v682, %v681
    %v922 = vpack.c.b16 %v684, %v683
    %v923 = vpack.c.b16 %v686, %v685
    %v924 = vpack.c.b16 %v688, %v687
    %v925 = vpack.c.b16 %v690, %v689
    %v926 = vpack.c.b16 %v692, %v691
    %v927 = vpack.c.b16 %v694, %v693
    %v928 = vpack.c.b16 %v696, %v695
    %v929 = vpack.c.b16 %v698, %v697
    %v930 = vpack.c.b16 %v700, %v699
    %v931 = vpack.c.b16 %v702, %v701
    %v932 = vpack.c.b16 %v704, %v703
    %v933 = vpack.c.b16 %v706, %v705
    %v934 = vpack.c.b16 %v708, %v707
    %v935 = vpack.c.b16 %v710, %v709
    %v936 = vpack.c.b16 %v712, %v711
    %v937 = vpack.c.b16 %v714, %v713
    %v938 = vpack.c.b16 %v716, %v715
    %v939 = vpack.c.b16 %v718, %v717
    %v940 = vpack.c.b16 %v720, %v719
    %v941 = vpack.c.b16 %v722, %v721
    %v942 = vpack.c.b16 %v724, %v723
    %v943 = vpack.c.b16 %v726, %v725
    %v944 = vpack.c.b16 %v728, %v727
    %v945 = vpack.c.b16 %v730, %v729
    %v946 = vpack.c.b16 %v732, %v731
    %v947 = vpack.c.b16 %v734, %v733
    %v948 = vpack.c.b16 %v736, %v735
    %v949 = vpack.c.b16 %v738, %v737
    %v950 = vpack.c.b16 %v740, %v739
    %v951 = vpack.c.b16 %v742, %v741
    %v952 = vpack.c.b16 %v744, %v743
    %v953 = vpack.c.b16 %v746, %v745
    %v954 = vpack.c.b16 %v748, %v747
    %v955 = vpack.c.b16 %v750, %v749
    %v956 = vpack.c.b16 %v752, %v751
    %v957 = vpack.c.b16 %v754, %v753
    %v958 = vpack.c.b16 %v756, %v755
    %v959 = vpack.c.b16 %v758, %v757
    %v960 = vpack.c.b16 %v760, %v759
    %v961 = vpack.c.b16 %v762, %v761
    %v962 = vpack.c.b16 %v764, %v763
    %v963 = vpack.c.b16 %v766, %v765
    %v964 = vpack.c.b16 %v768, %v767
    %v965 = vpack.c.b16 %v770, %v769
    %v966 = vpack.c.b16 %v772, %v771
    %v967 = vpack.c.b16 %v774, %v773
    %v968 = vpack.c.b16 %v776, %v775
    %v969 = vpack.c.b16 %v778, %v777
    %v970 = vpack.c.b16 %v780, %v779
    %v971 = vpack.c.b16 %v782, %v781
    %v972 = vpack.c.b16 %v784, %v783
    %v973 = vpack.c.b16 %v786, %v785
    %v974 = vpack.c.b16 %v788, %v787
    %v975 = vpack.c.b16 %v790, %v789
    %v976 = vpack.c.b16 %v792, %v791
    %v977 = vpack.c.b16 %v794, %v793
    %v978 = vpack.c.b16 %v796, %v795
    %v979 = vpack.c.b16 %v798, %v797
    %v980 = vpack.c.b16 %v800, %v799
    %v981 = vpack.c.b16 %v802, %v801
    %v982 = vpack.c.b16 %v804, %v803
    %v983 = vpack.c.b16 %v806, %v805
    %v984 = vpack.c.b16 %v808, %v807
    %v985 = vpack.c.b16 %v810, %v809
    %v986 = vpack.c.b16 %v812, %v811
    %v987 = vpack.c.b16 %v814, %v813
    %v988 = vpack.c.b16 %v816, %v815
    %v989 = vpack.c.b16 %v818, %v817
    %v990 = vpack.c.b16 %v820, %v819
    %v991 = vpack.c.b16 %v822, %v821
    %v992 = vpack.c.b16 %v824, %v823
    %v993 = vpack.c.b16 %v826, %v825
    %v994 = vpack.c.b16 %v828, %v827
    %v995 = vpack.c.b16 %v830, %v829
    %v996 = vpack.c.b16 %v832, %v831
    %v997 = vpack.c.b16 %v834, %v833
    %v998 = vpack.c.b16 %v836, %v835
    %v999 = vpack.c.b16 %v838, %v837
    %v1000 = vpack.c.b16 %v840, %v839
    %v1001 = vpack.c.b16 %v842, %v841
    %v1002 = vpack.c.b16 %v844, %v843
    %v1003 = vpack.c.b16 %v846, %v845
    %v1004 = vpack.c.b16 %v848, %v847
    %v1005 = vpack.c.b16 %v850, %v849
    %v1006 = vpack.c.b16 %v852, %v851
    %v1007 = vpack.c.b16 %v854, %v853
    %v1008 = vpack.c.b16 %v856, %v855
    %v1009 = vpack.c.b16 %v858, %v857
    %v1010 = vpack.c.b16 %v860, %v859
    %v1011 = vpack.c.b16 %v862, %v861
    %v1012 = vpack.c.b16 %v864, %v863
    %v1013 = vpack.c.b16 %v866, %v865
    %v1014 = vpack.c.b16 %v868, %v867
    %v1015 = vpack.c.b16 %v870, %v869
    %v1016 = vpack.c.b16 %v872, %v871
    %v1017 = vpack.c.b16 %v874, %v873
    %v1018 = vpack.c.b16 %v876, %v875
    %v1019 = vpack.c.b16 %v878, %v877
    %v1020 = vpack.c.b16 %v880, %v879
    %v1021 = vpack.c.b16 %v882, %v881
    %v1022 = vpack.c.b16 %v884, %v883
    %v1023 = vpack.c.b16 %v886, %v885
    %v1024 = vpack.c.b16 %v888, %v887
    %v1025 = vpack.c.b16 %v890, %v889
    %v1026 = vpack.c.b16 %v892, %v891
    %v1027 = vpack.c.b16 %v894, %v893
    %v1028 = vpack.c.b16 %v896, %v895
    %v1029 = vpack.c.b16 %v898, %v897
    %v1030 = vpack.c.b16 %v900, %v899
    %v1031 = vpack.c.b16 %v902, %v901
    %v1032 = vpack.c.b16 %v904, %v903
    %1161 = vmatprep.subr.bf16.mxu0 0
    %1162 = vmatpush1.bf16.msra.mxu0 %v912
    %1163 = vmatprep.subr.bf16.mxu0 0
    %1164 = vmatpush1.bf16.msra.mxu0 %v911
    %1165 = vmatprep.subr.bf16.mxu0 0
    %1166 = vmatpush1.bf16.msra.mxu0 %v910
    %1167 = vmatprep.subr.bf16.mxu0 0
    %1168 = vmatpush1.bf16.msra.mxu0 %v909
    %1169 = vmatprep.subr.bf16.mxu0 0
    %1170 = vmatpush1.bf16.msra.mxu0 %v908
    %1171 = vmatprep.subr.bf16.mxu0 0
    %1172 = vmatpush1.bf16.msra.mxu0 %v907
    %1173 = vmatprep.subr.bf16.mxu0 0
    %1174 = vmatpush1.bf16.msra.mxu0 %v906
    %1175 = vmatprep.subr.bf16.mxu0 0
    %1176 = vmatpush1.bf16.msra.mxu0 %v905
    %1177 = vmatprep.subr.bf16.mxu0 0
    %1178 = vmatpush2.bf16.msra.mxu0 %v920
    %1179 = vmatprep.subr.bf16.mxu0 0
    %1180 = vmatpush2.bf16.msra.mxu0 %v919
    %1181 = vmatprep.subr.bf16.mxu0 0
    %1182 = vmatpush2.bf16.msra.mxu0 %v918
    %1183 = vmatprep.subr.bf16.mxu0 0
    %1184 = vmatpush2.bf16.msra.mxu0 %v917
    %1185 = vmatprep.subr.bf16.mxu0 0
    %1186 = vmatpush2.bf16.msra.mxu0 %v916
    %1187 = vmatprep.subr.bf16.mxu0 0
    %1188 = vmatpush2.bf16.msra.mxu0 %v915
    %1189 = vmatprep.subr.bf16.mxu0 0
    %1190 = vmatpush2.bf16.msra.mxu0 %v914
    %1191 = vmatprep.subr.bf16.mxu0 0
    %1192 = vmatpush2.bf16.msra.mxu0 %v913
    %1193 = vmatprep.mubr.bf16.mxu0 %v115
    %1194 = vmatmul.mubr.bf16.gmra.mxu0 %v114
    %v1195 = vpop.f32.mrf.mxu0
    %v1196 = vadd.f32 %v391, %v1195
    %v1197 = vpop.f32.mrf.mxu0
    %v1198 = vpop.f32.mrf.mxu0
    %v1199 = vpop.f32.mrf.mxu0
    %1200 = vdwg.mxu0
    %1201 = vmatprep.subr.bf16.mxu0 0
    %1202 = vmatpush1.bf16.msra.mxu0 %v928
    %1203 = vmatprep.subr.bf16.mxu0 0
    %1204 = vmatpush1.bf16.msra.mxu0 %v927
    %1205 = vmatprep.subr.bf16.mxu0 0
    %1206 = vmatpush1.bf16.msra.mxu0 %v926
    %1207 = vmatprep.subr.bf16.mxu0 0
    %1208 = vmatpush1.bf16.msra.mxu0 %v925
    %1209 = vmatprep.subr.bf16.mxu0 0
    %1210 = vmatpush1.bf16.msra.mxu0 %v924
    %1211 = vmatprep.subr.bf16.mxu0 0
    %1212 = vmatpush1.bf16.msra.mxu0 %v923
    %1213 = vmatprep.subr.bf16.mxu0 0
    %1214 = vmatpush1.bf16.msra.mxu0 %v922
    %1215 = vmatprep.subr.bf16.mxu0 0
    %1216 = vmatpush1.bf16.msra.mxu0 %v921
    %1217 = vmatprep.subr.bf16.mxu0 0
    %1218 = vmatpush2.bf16.msra.mxu0 %v936
    %1219 = vmatprep.subr.bf16.mxu0 0
    %1220 = vmatpush2.bf16.msra.mxu0 %v935
    %1221 = vmatprep.subr.bf16.mxu0 0
    %1222 = vmatpush2.bf16.msra.mxu0 %v934
    %1223 = vmatprep.subr.bf16.mxu0 0
    %1224 = vmatpush2.bf16.msra.mxu0 %v933
    %1225 = vmatprep.subr.bf16.mxu0 0
    %1226 = vmatpush2.bf16.msra.mxu0 %v932
    %1227 = vmatprep.subr.bf16.mxu0 0
    %1228 = vmatpush2.bf16.msra.mxu0 %v931
    %1229 = vmatprep.subr.bf16.mxu0 0
    %1230 = vmatpush2.bf16.msra.mxu0 %v930
    %1231 = vmatprep.subr.bf16.mxu0 0
    %1232 = vmatpush2.bf16.msra.mxu0 %v929
    %1233 = vmatprep.mubr.bf16.mxu0 %v117
    %1234 = vmatmul.mubr.bf16.gmra.mxu0 %v116
    %v1235 = vpop.f32.mrf.mxu0
    %v1236 = vadd.f32 %v1196, %v1235
    %v1237 = vpop.f32.mrf.mxu0
    %v1238 = vpop.f32.mrf.mxu0
    %v1239 = vpop.f32.mrf.mxu0
    %1240 = vdwg.mxu0
    %1241 = vmatprep.subr.bf16.mxu0 0
    %1242 = vmatpush1.bf16.msra.mxu0 %v944
    %1243 = vmatprep.subr.bf16.mxu0 0
    %1244 = vmatpush1.bf16.msra.mxu0 %v943
    %1245 = vmatprep.subr.bf16.mxu0 0
    %1246 = vmatpush1.bf16.msra.mxu0 %v942
    %1247 = vmatprep.subr.bf16.mxu0 0
    %1248 = vmatpush1.bf16.msra.mxu0 %v941
    %1249 = vmatprep.subr.bf16.mxu0 0
    %1250 = vmatpush1.bf16.msra.mxu0 %v940
    %1251 = vmatprep.subr.bf16.mxu0 0
    %1252 = vmatpush1.bf16.msra.mxu0 %v939
    %1253 = vmatprep.subr.bf16.mxu0 0
    %1254 = vmatpush1.bf16.msra.mxu0 %v938
    %1255 = vmatprep.subr.bf16.mxu0 0
    %1256 = vmatpush1.bf16.msra.mxu0 %v937
    %1257 = vmatprep.subr.bf16.mxu0 0
    %1258 = vmatpush2.bf16.msra.mxu0 %v952
    %1259 = vmatprep.subr.bf16.mxu0 0
    %1260 = vmatpush2.bf16.msra.mxu0 %v951
    %1261 = vmatprep.subr.bf16.mxu0 0
    %1262 = vmatpush2.bf16.msra.mxu0 %v950
    %1263 = vmatprep.subr.bf16.mxu0 0
    %1264 = vmatpush2.bf16.msra.mxu0 %v949
    %1265 = vmatprep.subr.bf16.mxu0 0
    %1266 = vmatpush2.bf16.msra.mxu0 %v948
    %1267 = vmatprep.subr.bf16.mxu0 0
    %1268 = vmatpush2.bf16.msra.mxu0 %v947
    %1269 = vmatprep.subr.bf16.mxu0 0
    %1270 = vmatpush2.bf16.msra.mxu0 %v946
    %1271 = vmatprep.subr.bf16.mxu0 0
    %1272 = vmatpush2.bf16.msra.mxu0 %v945
    %1273 = vmatprep.mubr.bf16.mxu0 %v119
    %1274 = vmatmul.mubr.bf16.gmra.mxu0 %v118
    %v1275 = vpop.f32.mrf.mxu0
    %v1276 = vadd.f32 %v1236, %v1275
    %v1277 = vpop.f32.mrf.mxu0
    %v1278 = vpop.f32.mrf.mxu0
    %v1279 = vpop.f32.mrf.mxu0
    %1280 = vdwg.mxu0
    %1281 = vmatprep.subr.bf16.mxu0 0
    %1282 = vmatpush1.bf16.msra.mxu0 %v960
    %1283 = vmatprep.subr.bf16.mxu0 0
    %1284 = vmatpush1.bf16.msra.mxu0 %v959
    %1285 = vmatprep.subr.bf16.mxu0 0
    %1286 = vmatpush1.bf16.msra.mxu0 %v958
    %1287 = vmatprep.subr.bf16.mxu0 0
    %1288 = vmatpush1.bf16.msra.mxu0 %v957
    %1289 = vmatprep.subr.bf16.mxu0 0
    %1290 = vmatpush1.bf16.msra.mxu0 %v956
    %1291 = vmatprep.subr.bf16.mxu0 0
    %1292 = vmatpush1.bf16.msra.mxu0 %v955
    %1293 = vmatprep.subr.bf16.mxu0 0
    %1294 = vmatpush1.bf16.msra.mxu0 %v954
    %1295 = vmatprep.subr.bf16.mxu0 0
    %1296 = vmatpush1.bf16.msra.mxu0 %v953
    %1297 = vmatprep.subr.bf16.mxu0 0
    %1298 = vmatpush2.bf16.msra.mxu0 %v968
    %1299 = vmatprep.subr.bf16.mxu0 0
    %1300 = vmatpush2.bf16.msra.mxu0 %v967
    %1301 = vmatprep.subr.bf16.mxu0 0
    %1302 = vmatpush2.bf16.msra.mxu0 %v966
    %1303 = vmatprep.subr.bf16.mxu0 0
    %1304 = vmatpush2.bf16.msra.mxu0 %v965
    %1305 = vmatprep.subr.bf16.mxu0 0
    %1306 = vmatpush2.bf16.msra.mxu0 %v964
    %1307 = vmatprep.subr.bf16.mxu0 0
    %1308 = vmatpush2.bf16.msra.mxu0 %v963
    %1309 = vmatprep.subr.bf16.mxu0 0
    %1310 = vmatpush2.bf16.msra.mxu0 %v962
    %1311 = vmatprep.subr.bf16.mxu0 0
    %1312 = vmatpush2.bf16.msra.mxu0 %v961
    %1313 = vmatprep.mubr.bf16.mxu0 %v121
    %1314 = vmatmul.mubr.bf16.gmra.mxu0 %v120
    %v1315 = vpop.f32.mrf.mxu0
    %v1316 = vadd.f32 %v1276, %v1315
    %v1317 = vpop.f32.mrf.mxu0
    %v1318 = vpop.f32.mrf.mxu0
    %v1319 = vpop.f32.mrf.mxu0
    %1320 = vdwg.mxu0
    %1321 = vmatprep.subr.bf16.mxu0 0
    %1322 = vmatpush1.bf16.msra.mxu0 %v976
    %1323 = vmatprep.subr.bf16.mxu0 0
    %1324 = vmatpush1.bf16.msra.mxu0 %v975
    %1325 = vmatprep.subr.bf16.mxu0 0
    %1326 = vmatpush1.bf16.msra.mxu0 %v974
    %1327 = vmatprep.subr.bf16.mxu0 0
    %1328 = vmatpush1.bf16.msra.mxu0 %v973
    %1329 = vmatprep.subr.bf16.mxu0 0
    %1330 = vmatpush1.bf16.msra.mxu0 %v972
    %1331 = vmatprep.subr.bf16.mxu0 0
    %1332 = vmatpush1.bf16.msra.mxu0 %v971
    %1333 = vmatprep.subr.bf16.mxu0 0
    %1334 = vmatpush1.bf16.msra.mxu0 %v970
    %1335 = vmatprep.subr.bf16.mxu0 0
    %1336 = vmatpush1.bf16.msra.mxu0 %v969
    %1337 = vmatprep.subr.bf16.mxu0 0
    %1338 = vmatpush2.bf16.msra.mxu0 %v984
    %1339 = vmatprep.subr.bf16.mxu0 0
    %1340 = vmatpush2.bf16.msra.mxu0 %v983
    %1341 = vmatprep.subr.bf16.mxu0 0
    %1342 = vmatpush2.bf16.msra.mxu0 %v982
    %1343 = vmatprep.subr.bf16.mxu0 0
    %1344 = vmatpush2.bf16.msra.mxu0 %v981
    %1345 = vmatprep.subr.bf16.mxu0 0
    %1346 = vmatpush2.bf16.msra.mxu0 %v980
    %1347 = vmatprep.subr.bf16.mxu0 0
    %1348 = vmatpush2.bf16.msra.mxu0 %v979
    %1349 = vmatprep.subr.bf16.mxu0 0
    %1350 = vmatpush2.bf16.msra.mxu0 %v978
    %1351 = vmatprep.subr.bf16.mxu0 0
    %1352 = vmatpush2.bf16.msra.mxu0 %v977
    %1353 = vmatprep.mubr.bf16.mxu0 %v123
    %1354 = vmatmul.mubr.bf16.gmra.mxu0 %v122
    %v1355 = vpop.f32.mrf.mxu0
    %v1356 = vadd.f32 %v1316, %v1355
    %v1357 = vpop.f32.mrf.mxu0
    %v1358 = vpop.f32.mrf.mxu0
    %v1359 = vpop.f32.mrf.mxu0
    %1360 = vdwg.mxu0
    %1361 = vmatprep.subr.bf16.mxu0 0
    %1362 = vmatpush1.bf16.msra.mxu0 %v992
    %1363 = vmatprep.subr.bf16.mxu0 0
    %1364 = vmatpush1.bf16.msra.mxu0 %v991
    %1365 = vmatprep.subr.bf16.mxu0 0
    %1366 = vmatpush1.bf16.msra.mxu0 %v990
    %1367 = vmatprep.subr.bf16.mxu0 0
    %1368 = vmatpush1.bf16.msra.mxu0 %v989
    %1369 = vmatprep.subr.bf16.mxu0 0
    %1370 = vmatpush1.bf16.msra.mxu0 %v988
    %1371 = vmatprep.subr.bf16.mxu0 0
    %1372 = vmatpush1.bf16.msra.mxu0 %v987
    %1373 = vmatprep.subr.bf16.mxu0 0
    %1374 = vmatpush1.bf16.msra.mxu0 %v986
    %1375 = vmatprep.subr.bf16.mxu0 0
    %1376 = vmatpush1.bf16.msra.mxu0 %v985
    %1377 = vmatprep.subr.bf16.mxu0 0
    %1378 = vmatpush2.bf16.msra.mxu0 %v1000
    %1379 = vmatprep.subr.bf16.mxu0 0
    %1380 = vmatpush2.bf16.msra.mxu0 %v999
    %1381 = vmatprep.subr.bf16.mxu0 0
    %1382 = vmatpush2.bf16.msra.mxu0 %v998
    %1383 = vmatprep.subr.bf16.mxu0 0
    %1384 = vmatpush2.bf16.msra.mxu0 %v997
    %1385 = vmatprep.subr.bf16.mxu0 0
    %1386 = vmatpush2.bf16.msra.mxu0 %v996
    %1387 = vmatprep.subr.bf16.mxu0 0
    %1388 = vmatpush2.bf16.msra.mxu0 %v995
    %1389 = vmatprep.subr.bf16.mxu0 0
    %1390 = vmatpush2.bf16.msra.mxu0 %v994
    %1391 = vmatprep.subr.bf16.mxu0 0
    %1392 = vmatpush2.bf16.msra.mxu0 %v993
    %1393 = vmatprep.mubr.bf16.mxu0 %v125
    %1394 = vmatmul.mubr.bf16.gmra.mxu0 %v124
    %v1395 = vpop.f32.mrf.mxu0
    %v1396 = vadd.f32 %v1356, %v1395
    %v1397 = vpop.f32.mrf.mxu0
    %v1398 = vpop.f32.mrf.mxu0
    %v1399 = vpop.f32.mrf.mxu0
    %1400 = vdwg.mxu0
    %1401 = vmatprep.subr.bf16.mxu0 0
    %1402 = vmatpush1.bf16.msra.mxu0 %v1008
    %1403 = vmatprep.subr.bf16.mxu0 0
    %1404 = vmatpush1.bf16.msra.mxu0 %v1007
    %1405 = vmatprep.subr.bf16.mxu0 0
    %1406 = vmatpush1.bf16.msra.mxu0 %v1006
    %1407 = vmatprep.subr.bf16.mxu0 0
    %1408 = vmatpush1.bf16.msra.mxu0 %v1005
    %1409 = vmatprep.subr.bf16.mxu0 0
    %1410 = vmatpush1.bf16.msra.mxu0 %v1004
    %1411 = vmatprep.subr.bf16.mxu0 0
    %1412 = vmatpush1.bf16.msra.mxu0 %v1003
    %1413 = vmatprep.subr.bf16.mxu0 0
    %1414 = vmatpush1.bf16.msra.mxu0 %v1002
    %1415 = vmatprep.subr.bf16.mxu0 0
    %1416 = vmatpush1.bf16.msra.mxu0 %v1001
    %1417 = vmatprep.subr.bf16.mxu0 0
    %1418 = vmatpush2.bf16.msra.mxu0 %v1016
    %1419 = vmatprep.subr.bf16.mxu0 0
    %1420 = vmatpush2.bf16.msra.mxu0 %v1015
    %1421 = vmatprep.subr.bf16.mxu0 0
    %1422 = vmatpush2.bf16.msra.mxu0 %v1014
    %1423 = vmatprep.subr.bf16.mxu0 0
    %1424 = vmatpush2.bf16.msra.mxu0 %v1013
    %1425 = vmatprep.subr.bf16.mxu0 0
    %1426 = vmatpush2.bf16.msra.mxu0 %v1012
    %1427 = vmatprep.subr.bf16.mxu0 0
    %1428 = vmatpush2.bf16.msra.mxu0 %v1011
    %1429 = vmatprep.subr.bf16.mxu0 0
    %1430 = vmatpush2.bf16.msra.mxu0 %v1010
    %1431 = vmatprep.subr.bf16.mxu0 0
    %1432 = vmatpush2.bf16.msra.mxu0 %v1009
    %1433 = vmatprep.mubr.bf16.mxu0 %v127
    %1434 = vmatmul.mubr.bf16.gmra.mxu0 %v126
    %v1435 = vpop.f32.mrf.mxu0
    %v1436 = vadd.f32 %v1396, %v1435
    %v1437 = vpop.f32.mrf.mxu0
    %v1438 = vpop.f32.mrf.mxu0
    %v1439 = vpop.f32.mrf.mxu0
    %1440 = vdwg.mxu0
    %1441 = vmatprep.subr.bf16.mxu0 0
    %1442 = vmatpush1.bf16.msra.mxu0 %v1024
    %1443 = vmatprep.subr.bf16.mxu0 0
    %1444 = vmatpush1.bf16.msra.mxu0 %v1023
    %1445 = vmatprep.subr.bf16.mxu0 0
    %1446 = vmatpush1.bf16.msra.mxu0 %v1022
    %1447 = vmatprep.subr.bf16.mxu0 0
    %1448 = vmatpush1.bf16.msra.mxu0 %v1021
    %1449 = vmatprep.subr.bf16.mxu0 0
    %1450 = vmatpush1.bf16.msra.mxu0 %v1020
    %1451 = vmatprep.subr.bf16.mxu0 0
    %1452 = vmatpush1.bf16.msra.mxu0 %v1019
    %1453 = vmatprep.subr.bf16.mxu0 0
    %1454 = vmatpush1.bf16.msra.mxu0 %v1018
    %1455 = vmatprep.subr.bf16.mxu0 0
    %1456 = vmatpush1.bf16.msra.mxu0 %v1017
    %1457 = vmatprep.subr.bf16.mxu0 0
    %1458 = vmatpush2.bf16.msra.mxu0 %v1032
    %1459 = vmatprep.subr.bf16.mxu0 0
    %1460 = vmatpush2.bf16.msra.mxu0 %v1031
    %1461 = vmatprep.subr.bf16.mxu0 0
    %1462 = vmatpush2.bf16.msra.mxu0 %v1030
    %1463 = vmatprep.subr.bf16.mxu0 0
    %1464 = vmatpush2.bf16.msra.mxu0 %v1029
    %1465 = vmatprep.subr.bf16.mxu0 0
    %1466 = vmatpush2.bf16.msra.mxu0 %v1028
    %1467 = vmatprep.subr.bf16.mxu0 0
    %1468 = vmatpush2.bf16.msra.mxu0 %v1027
    %1469 = vmatprep.subr.bf16.mxu0 0
    %1470 = vmatpush2.bf16.msra.mxu0 %v1026
    %1471 = vmatprep.subr.bf16.mxu0 0
    %1472 = vmatpush2.bf16.msra.mxu0 %v1025
    %1473 = vmatprep.mubr.bf16.mxu0 %v129
    %1474 = vmatmul.mubr.bf16.gmra.mxu0 %v128
    %v1475 = vpop.f32.mrf.mxu0
    %v1476 = vadd.f32 %v1436, %v1475
    %v1477 = vpop.f32.mrf.mxu0
    %v1478 = vpop.f32.mrf.mxu0
    %v1479 = vpop.f32.mrf.mxu0
    %1480 = vdwg.mxu0
    %v1481 = vmax.f32 %v1476, 0.0
    %v1482 = vpack.c.bf16 %v1481, %v1481
    %v1483 = vld [vmem:[%s3] sm:$0xf]
    %v1484 = vld [vmem:[%s3 + $0x4] sm:$0xf]
    %v1485 = vld [vmem:[%s3 + $0x8] sm:$0xf]
    %v1486 = vld [vmem:[%s3 + $0xc] sm:$0xf]
    %v1487 = vld [vmem:[%s4] sm:$0x1]
    %v1489 = vlaneseq
    %v1490 = vshrl.u32 %v1489, 7
    %v1491 = vsub.s32 0, %v1490
    %v1492 = vrot.slane %v1487, %v1491
    %v1498 = vunpack.c.l.b16 %v1483
    %v1499 = vunpack.c.l.b16 %v1484
    %v1500 = vunpack.c.l.b16 %v1485
    %v1501 = vunpack.c.l.b16 %v1486
    %v1502 = vpack.c.b16 %v1499, %v1498
    %v1503 = vpack.c.b16 %v1501, %v1500
    %vm1506 = vcmask 261120
    %v1508 = vsel %vm1506, %v1482, 0
    %1510 = vmatprep.subr.bf16.mxu0 0
    %1511 = vmatpush1.bf16.msra.mxu0 0
    %1512 = vmatprep.subr.bf16.mxu0 0
    %1513 = vmatpush1.bf16.msra.mxu0 0
    %1514 = vmatprep.subr.bf16.mxu0 0
    %1515 = vmatpush1.bf16.msra.mxu0 0
    %1516 = vmatprep.subr.bf16.mxu0 0
    %1517 = vmatpush1.bf16.msra.mxu0 0
    %1518 = vmatprep.subr.bf16.mxu0 0
    %1519 = vmatpush1.bf16.msra.mxu0 0
    %1520 = vmatprep.subr.bf16.mxu0 0
    %1521 = vmatpush1.bf16.msra.mxu0 0
    %1522 = vmatprep.subr.bf16.mxu0 0
    %1523 = vmatpush1.bf16.msra.mxu0 %v1503
    %1524 = vmatprep.subr.bf16.mxu0 0
    %1525 = vmatpush1.bf16.msra.mxu0 %v1502
    %1526 = vmatprep.subr.bf16.mxu0 0
    %1527 = vmatpush2.bf16.msra.mxu0 0
    %1528 = vmatprep.subr.bf16.mxu0 0
    %1529 = vmatpush2.bf16.msra.mxu0 0
    %1530 = vmatprep.subr.bf16.mxu0 0
    %1531 = vmatpush2.bf16.msra.mxu0 0
    %1532 = vmatprep.subr.bf16.mxu0 0
    %1533 = vmatpush2.bf16.msra.mxu0 0
    %1534 = vmatprep.subr.bf16.mxu0 0
    %1535 = vmatpush2.bf16.msra.mxu0 0
    %1536 = vmatprep.subr.bf16.mxu0 0
    %1537 = vmatpush2.bf16.msra.mxu0 0
    %1538 = vmatprep.subr.bf16.mxu0 0
    %1539 = vmatpush2.bf16.msra.mxu0 0
    %1540 = vmatprep.subr.bf16.mxu0 0
    %1541 = vmatpush2.bf16.msra.mxu0 0
    %1542 = vmatprep.mubr.bf16.mxu0 0
    %1543 = vmatmul.mubr.bf16.gmra.mxu0 %v1508
    %v1544 = vpop.f32.mrf.mxu0
    %v1545 = vadd.f32 %v1492, %v1544
    %v1546 = vpop.f32.mrf.mxu0
    %v1547 = vpop.f32.mrf.mxu0
    %v1548 = vpop.f32.mrf.mxu0
    %1549 = vdwg.mxu0
    %v1550 = vmax.f32 %v1545, 0.0
    %vm1551 = vcmask 254976
    %1552 = vst.msk [vmem:[#allocation2] sm:$0x3] %vm1551, %v1550
    // Predicated region
    $region22: #{box_head_forward.3} parent=1 // pred_check
      _
    $region23: #{box_head_forward.3} parent=1 // pred_check_branch
      %1554 = sbr.rel (0) target = $region25
    $region24: #{box_head_forward.3} parent=1 // pred_region
      %s1556 = ssub.s32 32, 32
      %1557 = vsyncadd [#allocation3], %s1556
      %s1559 = sshll.u32 [#allocation2], 4
      %s1560 = int_to_ptr.vmem [resolvable:$true] %s1559
      %1562 = dma.vmem_to_hbm [thread:$0]  %s1560, 32, %s5, [#allocation3]
    $region25: #{box_head_forward.3} parent=1 // pred_fallthru
      _
    // Predicated region
    $region26: #{box_head_forward.3} parent=1 // pred_check
      _
    $region27: #{box_head_forward.3} parent=1 // pred_check_branch
      %1564 = sbr.rel (0) target = $region29
    $region28: #{box_head_forward.3} parent=1 // pred_region
      %1565 = dma.done [#allocation3], 32
    $region29: #{box_head_forward.3} parent=1 // pred_fallthru
      _
    %1566 = vsyncpa [#allocation3], 1

// kernel: box_head_forward.2
$region0: #{box_head_forward.2}
  #allocation0 [shape = 'u32[]', space=smem, size = 0x4, offset = 0x4, fixed_abs, tag = 'smem constant byte address 0x4 - core index']
  #allocation1 [shape = 'u32[144,128]{1,0:T(1,128)}', space=vmem, size = 0x12000, scoped, tag = 'internal scratch']
  #allocation2 [shape = 'f32[2,32,64]{2,1,0:T(8,128)}', space=vmem, size = 0x8000, scoped, tag = 'scratch operand']
  #allocation3 [shape = 'f32[2,32,128]{2,1,0:T(8,128)}', space=vmem, size = 0x8000, scoped, tag = 'scratch operand']
  %s0 = inlined_call_operand.vmem [shape: f32[2,16,64], index: 0, kind: input, shape index: {}]
  %s1 = inlined_call_operand.vmem [shape: bf16[3,64,128], index: 1, kind: input, shape index: {}]
  %s2 = inlined_call_operand.vmem [shape: f32[1,128], index: 2, kind: input, shape index: {}]
  %s3 = inlined_call_operand.vmem [shape: bf16[3,128,128], index: 3, kind: input, shape index: {}]
  %s4 = inlined_call_operand.vmem [shape: f32[1,128], index: 4, kind: input, shape index: {}]
  %s5 = inlined_call_operand.vmem [shape: f32[2,16,128], index: 5, kind: output, shape index: {}]
  %s6 = sld [smem:[#allocation0]]
  $region30: #{box_head_forward.2} parent=0
    _
  %s8 = ssub.s32 1, %s6
  %s9 = scalar_select 0, %s8, %s6
  // Predicated region
  $region2: #{box_head_forward.2} parent=0 // pred_check
    _
  $region3: #{box_head_forward.2} parent=0 // pred_check_branch
    %11 = sbr.rel (0) target = $region5
  $region4: #{box_head_forward.2} parent=0 // pred_region
    _
  $region5: #{box_head_forward.2} parent=0 // pred_fallthru
    _
  // Predicated region
  $region6: #{box_head_forward.2} parent=0 // pred_check
    _
  $region7: #{box_head_forward.2} parent=0 // pred_check_branch
    %13 = sbr.rel (0) target = $region9
  $region8: #{box_head_forward.2} parent=0 // pred_region
    _
  $region9: #{box_head_forward.2} parent=0 // pred_fallthru
    _
  // Predicated region
  $region10: #{box_head_forward.2} parent=0 // pred_check
    _
  $region11: #{box_head_forward.2} parent=0 // pred_check_branch
    %15 = sbr.rel (0) target = $region13
  $region12: #{box_head_forward.2} parent=0 // pred_region
    _
  $region13: #{box_head_forward.2} parent=0 // pred_fallthru
    _
  // Predicated region
  $region14: #{box_head_forward.2} parent=0 // pred_check
    _
  $region15: #{box_head_forward.2} parent=0 // pred_check_branch
    %17 = sbr.rel (0) target = $region17
  $region16: #{box_head_forward.2} parent=0 // pred_region
    _
  $region17: #{box_head_forward.2} parent=0 // pred_fallthru
    _
  // Predicated region
  $region18: #{box_head_forward.2} parent=0 // pred_check
    _
  $region19: #{box_head_forward.2} parent=0 // pred_check_branch
    %19 = sbr.rel (0) target = $region21
  $region20: #{box_head_forward.2} parent=0 // pred_region
    _
  $region21: #{box_head_forward.2} parent=0 // pred_fallthru
    _
  %v21 = vld [vmem:[%s0] sm:$0xff]
  %v22 = vld [vmem:[%s0 + $0x8] sm:$0xff]
  %v23 = vld [vmem:[%s0 + $0x10] sm:$0xff]
  %v24 = vld [vmem:[%s0 + $0x18] sm:$0xff]
  %vm25 = vcmask 523264
  %26 = vst.msk [vmem:[#allocation2] sm:$0xff] %vm25, 0.0
  %27 = vst.msk [vmem:[#allocation2 + $0x8] sm:$0xff] %vm25, 0.0
  %28 = vst.msk [vmem:[#allocation2 + $0x10] sm:$0xff] %vm25, 0.0
  %29 = vst.msk [vmem:[#allocation2 + $0x18] sm:$0xff] %vm25, 0.0
  %30 = vst.msk [vmem:[#allocation2 + $0x20] sm:$0xff] %vm25, 0.0
  %31 = vst.msk [vmem:[#allocation2 + $0x28] sm:$0xff] %vm25, 0.0
  %32 = vst.msk [vmem:[#allocation2 + $0x30] sm:$0xff] %vm25, 0.0
  %33 = vst.msk [vmem:[#allocation2 + $0x38] sm:$0xff] %vm25, 0.0
  %34 = vst.msk [vmem:[#allocation2 + $0x8] sm:$0xff] %vm25, %v21
  %35 = vst.msk [vmem:[#allocation2 + $0x10] sm:$0xff] %vm25, %v22
  %36 = vst.msk [vmem:[#allocation2 + $0x28] sm:$0xff] %vm25, %v23
  %37 = vst.msk [vmem:[#allocation2 + $0x30] sm:$0xff] %vm25, %v24
  %v38 = vld [vmem:[#allocation2] sm:$0xff]
  %v39 = vld [vmem:[#allocation2 + $0x8] sm:$0xff]
  %v40 = vld [vmem:[#allocation2 + $0x10] sm:$0xff]
  %v41 = vld [vmem:[#allocation2 + $0x18] sm:$0xff]
  %v42 = vld [vmem:[#allocation2 + $0x20] sm:$0xff]
  %v43 = vld [vmem:[#allocation2 + $0x28] sm:$0xff]
  %v44 = vld [vmem:[#allocation2 + $0x30] sm:$0xff]
  %v45 = vld [vmem:[#allocation2 + $0x38] sm:$0xff]
  %v46 = vld [vmem:[%s2] sm:$0x1]
  %v48 = vlaneseq
  %v49 = vshrl.u32 %v48, 7
  %v50 = vsub.s32 0, %v49
  %v51 = vrot.slane %v46, %v50
  %v53 = vpack.c.bf16 %v39, %v38
  %v54 = vpack.c.bf16 %v40, %v40
  %v55 = vpack.c.bf16 %v43, %v42
  %v56 = vpack.c.bf16 %v44, %v44
  %v57 = vld [vmem:[%s1] sm:$0xf]
  %v58 = vld [vmem:[%s1 + $0x4] sm:$0xf]
  %v59 = vld [vmem:[%s1 + $0x8] sm:$0xf]
  %v60 = vld [vmem:[%s1 + $0xc] sm:$0xf]
  %v61 = vld [vmem:[%s1 + $0x10] sm:$0xf]
  %v62 = vld [vmem:[%s1 + $0x14] sm:$0xf]
  %v63 = vld [vmem:[%s1 + $0x18] sm:$0xf]
  %v64 = vld [vmem:[%s1 + $0x1c] sm:$0xf]
  %vm65 = vsmask.f32 4352
  %v67 = vshrl.u32 %v53, 16
  %v69 = vrot.slane %v67, 3
  %v70 = vshll.u32 %v53, 16
  %v72 = vrot.slane %v70, 4
  %v73 = vor.u32 %v69, %v72
  %v75 = vshrl.u32 %v54, 16
  %v77 = vrot.slane %v75, 3
  %v78 = vshll.u32 %v54, 16
  %v80 = vrot.slane %v78, 4
  %v81 = vor.u32 %v77, %v80
  %v82 = vsel %vm65, %v73, %v81
  %v84 = vshrl.u32 %v55, 16
  %v86 = vrot.slane %v84, 3
  %v87 = vshll.u32 %v55, 16
  %v89 = vrot.slane %v87, 4
  %v90 = vor.u32 %v86, %v89
  %v92 = vshrl.u32 %v56, 16
  %v94 = vrot.slane %v92, 3
  %v95 = vshll.u32 %v56, 16
  %v97 = vrot.slane %v95, 4
  %v98 = vor.u32 %v94, %v97
  %v99 = vsel %vm65, %v90, %v98
  %v108 = vunpack.c.l.b16 %v57
  %v109 = vunpack.c.l.b16 %v58
  %v110 = vunpack.c.l.b16 %v59
  %v111 = vunpack.c.l.b16 %v60
  %v112 = vunpack.c.l.b16 %v61
  %v113 = vunpack.c.l.b16 %v62
  %v114 = vunpack.c.l.b16 %v63
  %v115 = vunpack.c.l.b16 %v64
  %v116 = vpack.c.b16 %v109, %v108
  %v117 = vpack.c.b16 %v111, %v110
  %v118 = vpack.c.b16 %v113, %v112
  %v119 = vpack.c.b16 %v115, %v114
  %v125 = vsel %vm25, %v82, 0
  %v128 = vsel %vm25, %v99, 0
  %130 = vmatprep.subr.bf16.mxu0 0
  %131 = vmatpush1.bf16.msra.mxu0 0
  %132 = vmatprep.subr.bf16.mxu0 0
  %133 = vmatpush1.bf16.msra.mxu0 0
  %134 = vmatprep.subr.bf16.mxu0 0
  %135 = vmatpush1.bf16.msra.mxu0 0
  %136 = vmatprep.subr.bf16.mxu0 0
  %137 = vmatpush1.bf16.msra.mxu0 0
  %138 = vmatprep.subr.bf16.mxu0 0
  %139 = vmatpush1.bf16.msra.mxu0 %v119
  %140 = vmatprep.subr.bf16.mxu0 0
  %141 = vmatpush1.bf16.msra.mxu0 %v118
  %142 = vmatprep.subr.bf16.mxu0 0
  %143 = vmatpush1.bf16.msra.mxu0 %v117
  %144 = vmatprep.subr.bf16.mxu0 0
  %145 = vmatpush1.bf16.msra.mxu0 %v116
  %146 = vmatprep.subr.bf16.mxu0 0
  %147 = vmatpush2.bf16.msra.mxu0 0
  %148 = vmatprep.subr.bf16.mxu0 0
  %149 = vmatpush2.bf16.msra.mxu0 0
  %150 = vmatprep.subr.bf16.mxu0 0
  %151 = vmatpush2.bf16.msra.mxu0 0
  %152 = vmatprep.subr.bf16.mxu0 0
  %153 = vmatpush2.bf16.msra.mxu0 0
  %154 = vmatprep.subr.bf16.mxu0 0
  %155 = vmatpush2.bf16.msra.mxu0 0
  %156 = vmatprep.subr.bf16.mxu0 0
  %157 = vmatpush2.bf16.msra.mxu0 0
  %158 = vmatprep.subr.bf16.mxu0 0
  %159 = vmatpush2.bf16.msra.mxu0 0
  %160 = vmatprep.subr.bf16.mxu0 0
  %161 = vmatpush2.bf16.msra.mxu0 0
  %162 = vmatprep.mubr.bf16.mxu0 0
  %163 = vmatmul.mubr.bf16.gmra.mxu0 %v125
  %v164 = vpop.f32.mrf.mxu0
  %v165 = vadd.f32 0.0, %v164
  %v166 = vpop.f32.mrf.mxu0
  %v167 = vpop.f32.mrf.mxu0
  %v168 = vadd.f32 0.0, %v167
  %v169 = vpop.f32.mrf.mxu0
  %170 = vmatprep.mubr.bf16.mxu0 0
  %171 = vmatmul.mubr.bf16.gmra.mxu0 %v128
  %v172 = vpop.f32.mrf.mxu0
  %v173 = vadd.f32 0.0, %v172
  %v174 = vpop.f32.mrf.mxu0
  %v175 = vpop.f32.mrf.mxu0
  %v176 = vadd.f32 0.0, %v175
  %v177 = vpop.f32.mrf.mxu0
  %178 = vdwg.mxu0
  %v179 = vadd.f32 %v51, %v165
  %v180 = vadd.f32 %v51, %v168
  %v181 = vadd.f32 %v51, %v173
  %v182 = vadd.f32 %v51, %v176
  %v183 = vpack.c.bf16 %v40, %v39
  %v184 = vpack.c.bf16 %v44, %v43
  %s185 = scalar_lea.vmem %s1, 32
  %v186 = vld [vmem:[%s185] sm:$0xf]
  %v187 = vld [vmem:[%s185 + $0x4] sm:$0xf]
  %v188 = vld [vmem:[%s185 + $0x8] sm:$0xf]
  %v189 = vld [vmem:[%s185 + $0xc] sm:$0xf]
  %v190 = vld [vmem:[%s185 + $0x10] sm:$0xf]
  %v191 = vld [vmem:[%s185 + $0x14] sm:$0xf]
  %v192 = vld [vmem:[%s185 + $0x18] sm:$0xf]
  %v193 = vld [vmem:[%s185 + $0x1c] sm:$0xf]
  %v202 = vunpack.c.l.b16 %v186
  %v203 = vunpack.c.l.b16 %v187
  %v204 = vunpack.c.l.b16 %v188
  %v205 = vunpack.c.l.b16 %v189
  %v206 = vunpack.c.l.b16 %v190
  %v207 = vunpack.c.l.b16 %v191
  %v208 = vunpack.c.l.b16 %v192
  %v209 = vunpack.c.l.b16 %v193
  %v210 = vpack.c.b16 %v203, %v202
  %v211 = vpack.c.b16 %v205, %v204
  %v212 = vpack.c.b16 %v207, %v206
  %v213 = vpack.c.b16 %v209, %v208
  %v219 = vsel %vm25, %v183, 0
  %v222 = vsel %vm25, %v184, 0
  %224 = vmatprep.subr.bf16.mxu0 0
  %225 = vmatpush1.bf16.msra.mxu0 0
  %226 = vmatprep.subr.bf16.mxu0 0
  %227 = vmatpush1.bf16.msra.mxu0 0
  %228 = vmatprep.subr.bf16.mxu0 0
  %229 = vmatpush1.bf16.msra.mxu0 0
  %230 = vmatprep.subr.bf16.mxu0 0
  %231 = vmatpush1.bf16.msra.mxu0 0
  %232 = vmatprep.subr.bf16.mxu0 0
  %233 = vmatpush1.bf16.msra.mxu0 %v213
  %234 = vmatprep.subr.bf16.mxu0 0
  %235 = vmatpush1.bf16.msra.mxu0 %v212
  %236 = vmatprep.subr.bf16.mxu0 0
  %237 = vmatpush1.bf16.msra.mxu0 %v211
  %238 = vmatprep.subr.bf16.mxu0 0
  %239 = vmatpush1.bf16.msra.mxu0 %v210
  %240 = vmatprep.subr.bf16.mxu0 0
  %241 = vmatpush2.bf16.msra.mxu0 0
  %242 = vmatprep.subr.bf16.mxu0 0
  %243 = vmatpush2.bf16.msra.mxu0 0
  %244 = vmatprep.subr.bf16.mxu0 0
  %245 = vmatpush2.bf16.msra.mxu0 0
  %246 = vmatprep.subr.bf16.mxu0 0
  %247 = vmatpush2.bf16.msra.mxu0 0
  %248 = vmatprep.subr.bf16.mxu0 0
  %249 = vmatpush2.bf16.msra.mxu0 0
  %250 = vmatprep.subr.bf16.mxu0 0
  %251 = vmatpush2.bf16.msra.mxu0 0
  %252 = vmatprep.subr.bf16.mxu0 0
  %253 = vmatpush2.bf16.msra.mxu0 0
  %254 = vmatprep.subr.bf16.mxu0 0
  %255 = vmatpush2.bf16.msra.mxu0 0
  %256 = vmatprep.mubr.bf16.mxu0 0
  %257 = vmatmul.mubr.bf16.gmra.mxu0 %v219
  %v258 = vpop.f32.mrf.mxu0
  %v259 = vadd.f32 0.0, %v258
  %v260 = vpop.f32.mrf.mxu0
  %v261 = vpop.f32.mrf.mxu0
  %v262 = vadd.f32 0.0, %v261
  %v263 = vpop.f32.mrf.mxu0
  %264 = vmatprep.mubr.bf16.mxu0 0
  %265 = vmatmul.mubr.bf16.gmra.mxu0 %v222
  %v266 = vpop.f32.mrf.mxu0
  %v267 = vadd.f32 0.0, %v266
  %v268 = vpop.f32.mrf.mxu0
  %v269 = vpop.f32.mrf.mxu0
  %v270 = vadd.f32 0.0, %v269
  %v271 = vpop.f32.mrf.mxu0
  %272 = vdwg.mxu0
  %v273 = vadd.f32 %v179, %v259
  %v274 = vadd.f32 %v180, %v262
  %v275 = vadd.f32 %v181, %v267
  %v276 = vadd.f32 %v182, %v270
  %v277 = vpack.c.bf16 %v41, %v41
  %v278 = vpack.c.bf16 %v45, %v45
  %s279 = scalar_lea.vmem %s1, 64
  %v280 = vld [vmem:[%s279] sm:$0xf]
  %v281 = vld [vmem:[%s279 + $0x4] sm:$0xf]
  %v282 = vld [vmem:[%s279 + $0x8] sm:$0xf]
  %v283 = vld [vmem:[%s279 + $0xc] sm:$0xf]
  %v284 = vld [vmem:[%s279 + $0x10] sm:$0xf]
  %v285 = vld [vmem:[%s279 + $0x14] sm:$0xf]
  %v286 = vld [vmem:[%s279 + $0x18] sm:$0xf]
  %v287 = vld [vmem:[%s279 + $0x1c] sm:$0xf]
  %vm288 = vsmask.f32 7424
  %v289 = vshrl.u32 %v183, 16
  %v291 = vshll.u32 %v183, 16
  %v293 = vrot.slane %v291, 1
  %v294 = vor.u32 %v289, %v293
  %v296 = vshll.u32 %v277, 16
  %v298 = vrot.slane %v296, 1
  %v299 = vsel %vm288, %v294, %v298
  %v300 = vshrl.u32 %v184, 16
  %v302 = vshll.u32 %v184, 16
  %v304 = vrot.slane %v302, 1
  %v305 = vor.u32 %v300, %v304
  %v307 = vshll.u32 %v278, 16
  %v309 = vrot.slane %v307, 1
  %v310 = vsel %vm288, %v305, %v309
  %v319 = vunpack.c.l.b16 %v280
  %v320 = vunpack.c.l.b16 %v281
  %v321 = vunpack.c.l.b16 %v282
  %v322 = vunpack.c.l.b16 %v283
  %v323 = vunpack.c.l.b16 %v284
  %v324 = vunpack.c.l.b16 %v285
  %v325 = vunpack.c.l.b16 %v286
  %v326 = vunpack.c.l.b16 %v287
  %v327 = vpack.c.b16 %v320, %v319
  %v328 = vpack.c.b16 %v322, %v321
  %v329 = vpack.c.b16 %v324, %v323
  %v330 = vpack.c.b16 %v326, %v325
  %v336 = vsel %vm25, %v299, 0
  %v339 = vsel %vm25, %v310, 0
  %341 = vmatprep.subr.bf16.mxu0 0
  %342 = vmatpush1.bf16.msra.mxu0 0
  %343 = vmatprep.subr.bf16.mxu0 0
  %344 = vmatpush1.bf16.msra.mxu0 0
  %345 = vmatprep.subr.bf16.mxu0 0
  %346 = vmatpush1.bf16.msra.mxu0 0
  %347 = vmatprep.subr.bf16.mxu0 0
  %348 = vmatpush1.bf16.msra.mxu0 0
  %349 = vmatprep.subr.bf16.mxu0 0
  %350 = vmatpush1.bf16.msra.mxu0 %v330
  %351 = vmatprep.subr.bf16.mxu0 0
  %352 = vmatpush1.bf16.msra.mxu0 %v329
  %353 = vmatprep.subr.bf16.mxu0 0
  %354 = vmatpush1.bf16.msra.mxu0 %v328
  %355 = vmatprep.subr.bf16.mxu0 0
  %356 = vmatpush1.bf16.msra.mxu0 %v327
  %357 = vmatprep.subr.bf16.mxu0 0
  %358 = vmatpush2.bf16.msra.mxu0 0
  %359 = vmatprep.subr.bf16.mxu0 0
  %360 = vmatpush2.bf16.msra.mxu0 0
  %361 = vmatprep.subr.bf16.mxu0 0
  %362 = vmatpush2.bf16.msra.mxu0 0
  %363 = vmatprep.subr.bf16.mxu0 0
  %364 = vmatpush2.bf16.msra.mxu0 0
  %365 = vmatprep.subr.bf16.mxu0 0
  %366 = vmatpush2.bf16.msra.mxu0 0
  %367 = vmatprep.subr.bf16.mxu0 0
  %368 = vmatpush2.bf16.msra.mxu0 0
  %369 = vmatprep.subr.bf16.mxu0 0
  %370 = vmatpush2.bf16.msra.mxu0 0
  %371 = vmatprep.subr.bf16.mxu0 0
  %372 = vmatpush2.bf16.msra.mxu0 0
  %373 = vmatprep.mubr.bf16.mxu0 0
  %374 = vmatmul.mubr.bf16.gmra.mxu0 %v336
  %v375 = vpop.f32.mrf.mxu0
  %v376 = vadd.f32 0.0, %v375
  %v377 = vpop.f32.mrf.mxu0
  %v378 = vpop.f32.mrf.mxu0
  %v379 = vadd.f32 0.0, %v378
  %v380 = vpop.f32.mrf.mxu0
  %381 = vmatprep.mubr.bf16.mxu0 0
  %382 = vmatmul.mubr.bf16.gmra.mxu0 %v339
  %v383 = vpop.f32.mrf.mxu0
  %v384 = vadd.f32 0.0, %v383
  %v385 = vpop.f32.mrf.mxu0
  %v386 = vpop.f32.mrf.mxu0
  %v387 = vadd.f32 0.0, %v386
  %v388 = vpop.f32.mrf.mxu0
  %389 = vdwg.mxu0
  %v390 = vadd.f32 %v273, %v376
  %v391 = vadd.f32 %v274, %v379
  %v392 = vadd.f32 %v275, %v384
  %v393 = vadd.f32 %v276, %v387
  %v394 = vmax.f32 %v390, 0.0
  %v395 = vmax.f32 %v391, 0.0
  %v396 = vmax.f32 %v392, 0.0
  %v397 = vmax.f32 %v393, 0.0
  %398 = vst [vmem:[#allocation3] sm:$0xff] 0.0
  %399 = vst [vmem:[#allocation3 + $0x8] sm:$0xff] 0.0
  %400 = vst [vmem:[#allocation3 + $0x10] sm:$0xff] 0.0
  %401 = vst [vmem:[#allocation3 + $0x18] sm:$0xff] 0.0
  %402 = vst [vmem:[#allocation3 + $0x20] sm:$0xff] 0.0
  %403 = vst [vmem:[#allocation3 + $0x28] sm:$0xff] 0.0
  %404 = vst [vmem:[#allocation3 + $0x30] sm:$0xff] 0.0
  %405 = vst [vmem:[#allocation3 + $0x38] sm:$0xff] 0.0
  %406 = vst [vmem:[#allocation3 + $0x8] sm:$0xff] %v394
  %407 = vst [vmem:[#allocation3 + $0x10] sm:$0xff] %v395
  %408 = vst [vmem:[#allocation3 + $0x28] sm:$0xff] %v396
  %409 = vst [vmem:[#allocation3 + $0x30] sm:$0xff] %v397
  %v410 = vld [vmem:[#allocation3] sm:$0xff]
  %v411 = vld [vmem:[#allocation3 + $0x8] sm:$0xff]
  %v412 = vld [vmem:[#allocation3 + $0x10] sm:$0xff]
  %v413 = vld [vmem:[#allocation3 + $0x18] sm:$0xff]
  %v414 = vld [vmem:[#allocation3 + $0x20] sm:$0xff]
  %v415 = vld [vmem:[#allocation3 + $0x28] sm:$0xff]
  %v416 = vld [vmem:[#allocation3 + $0x30] sm:$0xff]
  %v417 = vld [vmem:[#allocation3 + $0x38] sm:$0xff]
  %v418 = vld [vmem:[%s4] sm:$0x1]
  %v420 = vlaneseq
  %v421 = vshrl.u32 %v420, 7
  %v422 = vsub.s32 0, %v421
  %v423 = vrot.slane %v418, %v422
  %v425 = vpack.c.bf16 %v411, %v410
  %v426 = vpack.c.bf16 %v412, %v412
  %v427 = vpack.c.bf16 %v415, %v414
  %v428 = vpack.c.bf16 %v416, %v416
  %v429 = vld [vmem:[%s3] sm:$0xf]
  %v430 = vld [vmem:[%s3 + $0x4] sm:$0xf]
  %v431 = vld [vmem:[%s3 + $0x8] sm:$0xf]
  %v432 = vld [vmem:[%s3 + $0xc] sm:$0xf]
  %v433 = vld [vmem:[%s3 + $0x10] sm:$0xf]
  %v434 = vld [vmem:[%s3 + $0x14] sm:$0xf]
  %v435 = vld [vmem:[%s3 + $0x18] sm:$0xf]
  %v436 = vld [vmem:[%s3 + $0x1c] sm:$0xf]
  %v437 = vld [vmem:[%s3 + $0x20] sm:$0xf]
  %v438 = vld [vmem:[%s3 + $0x24] sm:$0xf]
  %v439 = vld [vmem:[%s3 + $0x28] sm:$0xf]
  %v440 = vld [vmem:[%s3 + $0x2c] sm:$0xf]
  %v441 = vld [vmem:[%s3 + $0x30] sm:$0xf]
  %v442 = vld [vmem:[%s3 + $0x34] sm:$0xf]
  %v443 = vld [vmem:[%s3 + $0x38] sm:$0xf]
  %v444 = vld [vmem:[%s3 + $0x3c] sm:$0xf]
  %v446 = vshrl.u32 %v425, 16
  %v448 = vrot.slane %v446, 3
  %v449 = vshll.u32 %v425, 16
  %v451 = vrot.slane %v449, 4
  %v452 = vor.u32 %v448, %v451
  %v454 = vshrl.u32 %v426, 16
  %v456 = vrot.slane %v454, 3
  %v457 = vshll.u32 %v426, 16
  %v459 = vrot.slane %v457, 4
  %v460 = vor.u32 %v456, %v459
  %v461 = vsel %vm65, %v452, %v460
  %v463 = vshrl.u32 %v427, 16
  %v465 = vrot.slane %v463, 3
  %v466 = vshll.u32 %v427, 16
  %v468 = vrot.slane %v466, 4
  %v469 = vor.u32 %v465, %v468
  %v471 = vshrl.u32 %v428, 16
  %v473 = vrot.slane %v471, 3
  %v474 = vshll.u32 %v428, 16
  %v476 = vrot.slane %v474, 4
  %v477 = vor.u32 %v473, %v476
  %v478 = vsel %vm65, %v469, %v477
  %v497 = vunpack.c.l.b16 %v429
  %v498 = vunpack.c.l.b16 %v430
  %v499 = vunpack.c.l.b16 %v431
  %v500 = vunpack.c.l.b16 %v432
  %v501 = vunpack.c.l.b16 %v433
  %v502 = vunpack.c.l.b16 %v434
  %v503 = vunpack.c.l.b16 %v435
  %v504 = vunpack.c.l.b16 %v436
  %v505 = vunpack.c.l.b16 %v437
  %v506 = vunpack.c.l.b16 %v438
  %v507 = vunpack.c.l.b16 %v439
  %v508 = vunpack.c.l.b16 %v440
  %v509 = vunpack.c.l.b16 %v441
  %v510 = vunpack.c.l.b16 %v442
  %v511 = vunpack.c.l.b16 %v443
  %v512 = vunpack.c.l.b16 %v444
  %v513 = vpack.c.b16 %v498, %v497
  %v514 = vpack.c.b16 %v500, %v499
  %v515 = vpack.c.b16 %v502, %v501
  %v516 = vpack.c.b16 %v504, %v503
  %v517 = vpack.c.b16 %v506, %v505
  %v518 = vpack.c.b16 %v508, %v507
  %v519 = vpack.c.b16 %v510, %v509
  %v520 = vpack.c.b16 %v512, %v511
  %529 = vmatprep.subr.bf16.mxu0 0
  %530 = vmatpush1.bf16.msra.mxu0 %v520
  %531 = vmatprep.subr.bf16.mxu0 0
  %532 = vmatpush1.bf16.msra.mxu0 %v519
  %533 = vmatprep.subr.bf16.mxu0 0
  %534 = vmatpush1.bf16.msra.mxu0 %v518
  %535 = vmatprep.subr.bf16.mxu0 0
  %536 = vmatpush1.bf16.msra.mxu0 %v517
  %537 = vmatprep.subr.bf16.mxu0 0
  %538 = vmatpush1.bf16.msra.mxu0 %v516
  %539 = vmatprep.subr.bf16.mxu0 0
  %540 = vmatpush1.bf16.msra.mxu0 %v515
  %541 = vmatprep.subr.bf16.mxu0 0
  %542 = vmatpush1.bf16.msra.mxu0 %v514
  %543 = vmatprep.subr.bf16.mxu0 0
  %544 = vmatpush1.bf16.msra.mxu0 %v513
  %545 = vmatprep.subr.bf16.mxu0 0
  %546 = vmatpush2.bf16.msra.mxu0 0
  %547 = vmatprep.subr.bf16.mxu0 0
  %548 = vmatpush2.bf16.msra.mxu0 0
  %549 = vmatprep.subr.bf16.mxu0 0
  %550 = vmatpush2.bf16.msra.mxu0 0
  %551 = vmatprep.subr.bf16.mxu0 0
  %552 = vmatpush2.bf16.msra.mxu0 0
  %553 = vmatprep.subr.bf16.mxu0 0
  %554 = vmatpush2.bf16.msra.mxu0 0
  %555 = vmatprep.subr.bf16.mxu0 0
  %556 = vmatpush2.bf16.msra.mxu0 0
  %557 = vmatprep.subr.bf16.mxu0 0
  %558 = vmatpush2.bf16.msra.mxu0 0
  %559 = vmatprep.subr.bf16.mxu0 0
  %560 = vmatpush2.bf16.msra.mxu0 0
  %561 = vmatprep.mubr.bf16.mxu0 0
  %562 = vmatmul.mubr.bf16.gmra.mxu0 %v461
  %v563 = vpop.f32.mrf.mxu0
  %v564 = vadd.f32 0.0, %v563
  %v565 = vpop.f32.mrf.mxu0
  %v566 = vpop.f32.mrf.mxu0
  %v567 = vadd.f32 0.0, %v566
  %v568 = vpop.f32.mrf.mxu0
  %569 = vmatprep.mubr.bf16.mxu0 0
  %570 = vmatmul.mubr.bf16.gmra.mxu0 %v478
  %v571 = vpop.f32.mrf.mxu0
  %v572 = vadd.f32 0.0, %v571
  %v573 = vpop.f32.mrf.mxu0
  %v574 = vpop.f32.mrf.mxu0
  %v575 = vadd.f32 0.0, %v574
  %v576 = vpop.f32.mrf.mxu0
  %577 = vdwg.mxu0
  %v578 = vadd.f32 %v423, %v564
  %v579 = vadd.f32 %v423, %v567
  %v580 = vadd.f32 %v423, %v572
  %v581 = vadd.f32 %v423, %v575
  %v582 = vpack.c.bf16 %v412, %v411
  %v583 = vpack.c.bf16 %v416, %v415
  %s584 = scalar_lea.vmem %s3, 64
  %v585 = vld [vmem:[%s584] sm:$0xf]
  %v586 = vld [vmem:[%s584 + $0x4] sm:$0xf]
  %v587 = vld [vmem:[%s584 + $0x8] sm:$0xf]
  %v588 = vld [vmem:[%s584 + $0xc] sm:$0xf]
  %v589 = vld [vmem:[%s584 + $0x10] sm:$0xf]
  %v590 = vld [vmem:[%s584 + $0x14] sm:$0xf]
  %v591 = vld [vmem:[%s584 + $0x18] sm:$0xf]
  %v592 = vld [vmem:[%s584 + $0x1c] sm:$0xf]
  %v593 = vld [vmem:[%s584 + $0x20] sm:$0xf]
  %v594 = vld [vmem:[%s584 + $0x24] sm:$0xf]
  %v595 = vld [vmem:[%s584 + $0x28] sm:$0xf]
  %v596 = vld [vmem:[%s584 + $0x2c] sm:$0xf]
  %v597 = vld [vmem:[%s584 + $0x30] sm:$0xf]
  %v598 = vld [vmem:[%s584 + $0x34] sm:$0xf]
  %v599 = vld [vmem:[%s584 + $0x38] sm:$0xf]
  %v600 = vld [vmem:[%s584 + $0x3c] sm:$0xf]
  %v617 = vunpack.c.l.b16 %v585
  %v618 = vunpack.c.l.b16 %v586
  %v619 = vunpack.c.l.b16 %v587
  %v620 = vunpack.c.l.b16 %v588
  %v621 = vunpack.c.l.b16 %v589
  %v622 = vunpack.c.l.b16 %v590
  %v623 = vunpack.c.l.b16 %v591
  %v624 = vunpack.c.l.b16 %v592
  %v625 = vunpack.c.l.b16 %v593
  %v626 = vunpack.c.l.b16 %v594
  %v627 = vunpack.c.l.b16 %v595
  %v628 = vunpack.c.l.b16 %v596
  %v629 = vunpack.c.l.b16 %v597
  %v630 = vunpack.c.l.b16 %v598
  %v631 = vunpack.c.l.b16 %v599
  %v632 = vunpack.c.l.b16 %v600
  %v633 = vpack.c.b16 %v618, %v617
  %v634 = vpack.c.b16 %v620, %v619
  %v635 = vpack.c.b16 %v622, %v621
  %v636 = vpack.c.b16 %v624, %v623
  %v637 = vpack.c.b16 %v626, %v625
  %v638 = vpack.c.b16 %v628, %v627
  %v639 = vpack.c.b16 %v630, %v629
  %v640 = vpack.c.b16 %v632, %v631
  %649 = vmatprep.subr.bf16.mxu0 0
  %650 = vmatpush1.bf16.msra.mxu0 %v640
  %651 = vmatprep.subr.bf16.mxu0 0
  %652 = vmatpush1.bf16.msra.mxu0 %v639
  %653 = vmatprep.subr.bf16.mxu0 0
  %654 = vmatpush1.bf16.msra.mxu0 %v638
  %655 = vmatprep.subr.bf16.mxu0 0
  %656 = vmatpush1.bf16.msra.mxu0 %v637
  %657 = vmatprep.subr.bf16.mxu0 0
  %658 = vmatpush1.bf16.msra.mxu0 %v636
  %659 = vmatprep.subr.bf16.mxu0 0
  %660 = vmatpush1.bf16.msra.mxu0 %v635
  %661 = vmatprep.subr.bf16.mxu0 0
  %662 = vmatpush1.bf16.msra.mxu0 %v634
  %663 = vmatprep.subr.bf16.mxu0 0
  %664 = vmatpush1.bf16.msra.mxu0 %v633
  %665 = vmatprep.subr.bf16.mxu0 0
  %666 = vmatpush2.bf16.msra.mxu0 0
  %667 = vmatprep.subr.bf16.mxu0 0
  %668 = vmatpush2.bf16.msra.mxu0 0
  %669 = vmatprep.subr.bf16.mxu0 0
  %670 = vmatpush2.bf16.msra.mxu0 0
  %671 = vmatprep.subr.bf16.mxu0 0
  %672 = vmatpush2.bf16.msra.mxu0 0
  %673 = vmatprep.subr.bf16.mxu0 0
  %674 = vmatpush2.bf16.msra.mxu0 0
  %675 = vmatprep.subr.bf16.mxu0 0
  %676 = vmatpush2.bf16.msra.mxu0 0
  %677 = vmatprep.subr.bf16.mxu0 0
  %678 = vmatpush2.bf16.msra.mxu0 0
  %679 = vmatprep.subr.bf16.mxu0 0
  %680 = vmatpush2.bf16.msra.mxu0 0
  %681 = vmatprep.mubr.bf16.mxu0 0
  %682 = vmatmul.mubr.bf16.gmra.mxu0 %v582
  %v683 = vpop.f32.mrf.mxu0
  %v684 = vadd.f32 0.0, %v683
  %v685 = vpop.f32.mrf.mxu0
  %v686 = vpop.f32.mrf.mxu0
  %v687 = vadd.f32 0.0, %v686
  %v688 = vpop.f32.mrf.mxu0
  %689 = vmatprep.mubr.bf16.mxu0 0
  %690 = vmatmul.mubr.bf16.gmra.mxu0 %v583
  %v691 = vpop.f32.mrf.mxu0
  %v692 = vadd.f32 0.0, %v691
  %v693 = vpop.f32.mrf.mxu0
  %v694 = vpop.f32.mrf.mxu0
  %v695 = vadd.f32 0.0, %v694
  %v696 = vpop.f32.mrf.mxu0
  %697 = vdwg.mxu0
  %v698 = vadd.f32 %v578, %v684
  %v699 = vadd.f32 %v579, %v687
  %v700 = vadd.f32 %v580, %v692
  %v701 = vadd.f32 %v581, %v695
  %v702 = vpack.c.bf16 %v413, %v413
  %v703 = vpack.c.bf16 %v417, %v417
  %s704 = scalar_lea.vmem %s3, 128
  %v705 = vld [vmem:[%s704] sm:$0xf]
  %v706 = vld [vmem:[%s704 + $0x4] sm:$0xf]
  %v707 = vld [vmem:[%s704 + $0x8] sm:$0xf]
  %v708 = vld [vmem:[%s704 + $0xc] sm:$0xf]
  %v709 = vld [vmem:[%s704 + $0x10] sm:$0xf]
  %v710 = vld [vmem:[%s704 + $0x14] sm:$0xf]
  %v711 = vld [vmem:[%s704 + $0x18] sm:$0xf]
  %v712 = vld [vmem:[%s704 + $0x1c] sm:$0xf]
  %v713 = vld [vmem:[%s704 + $0x20] sm:$0xf]
  %v714 = vld [vmem:[%s704 + $0x24] sm:$0xf]
  %v715 = vld [vmem:[%s704 + $0x28] sm:$0xf]
  %v716 = vld [vmem:[%s704 + $0x2c] sm:$0xf]
  %v717 = vld [vmem:[%s704 + $0x30] sm:$0xf]
  %v718 = vld [vmem:[%s704 + $0x34] sm:$0xf]
  %v719 = vld [vmem:[%s704 + $0x38] sm:$0xf]
  %v720 = vld [vmem:[%s704 + $0x3c] sm:$0xf]
  %v722 = vshrl.u32 %v582, 16
  %v724 = vshll.u32 %v582, 16
  %v726 = vrot.slane %v724, 1
  %v727 = vor.u32 %v722, %v726
  %v729 = vshll.u32 %v702, 16
  %v731 = vrot.slane %v729, 1
  %v732 = vsel %vm288, %v727, %v731
  %v734 = vshrl.u32 %v583, 16
  %v736 = vshll.u32 %v583, 16
  %v738 = vrot.slane %v736, 1
  %v739 = vor.u32 %v734, %v738
  %v741 = vshll.u32 %v703, 16
  %v743 = vrot.slane %v741, 1
  %v744 = vsel %vm288, %v739, %v743
  %v763 = vunpack.c.l.b16 %v705
  %v764 = vunpack.c.l.b16 %v706
  %v765 = vunpack.c.l.b16 %v707
  %v766 = vunpack.c.l.b16 %v708
  %v767 = vunpack.c.l.b16 %v709
  %v768 = vunpack.c.l.b16 %v710
  %v769 = vunpack.c.l.b16 %v711
  %v770 = vunpack.c.l.b16 %v712
  %v771 = vunpack.c.l.b16 %v713
  %v772 = vunpack.c.l.b16 %v714
  %v773 = vunpack.c.l.b16 %v715
  %v774 = vunpack.c.l.b16 %v716
  %v775 = vunpack.c.l.b16 %v717
  %v776 = vunpack.c.l.b16 %v718
  %v777 = vunpack.c.l.b16 %v719
  %v778 = vunpack.c.l.b16 %v720
  %v779 = vpack.c.b16 %v764, %v763
  %v780 = vpack.c.b16 %v766, %v765
  %v781 = vpack.c.b16 %v768, %v767
  %v782 = vpack.c.b16 %v770, %v769
  %v783 = vpack.c.b16 %v772, %v771
  %v784 = vpack.c.b16 %v774, %v773
  %v785 = vpack.c.b16 %v776, %v775
  %v786 = vpack.c.b16 %v778, %v777
  %795 = vmatprep.subr.bf16.mxu0 0
  %796 = vmatpush1.bf16.msra.mxu0 %v786
  %797 = vmatprep.subr.bf16.mxu0 0
  %798 = vmatpush1.bf16.msra.mxu0 %v785
  %799 = vmatprep.subr.bf16.mxu0 0
  %800 = vmatpush1.bf16.msra.mxu0 %v784
  %801 = vmatprep.subr.bf16.mxu0 0
  %802 = vmatpush1.bf16.msra.mxu0 %v783
  %803 = vmatprep.subr.bf16.mxu0 0
  %804 = vmatpush1.bf16.msra.mxu0 %v782
  %805 = vmatprep.subr.bf16.mxu0 0
  %806 = vmatpush1.bf16.msra.mxu0 %v781
  %807 = vmatprep.subr.bf16.mxu0 0
  %808 = vmatpush1.bf16.msra.mxu0 %v780
  %809 = vmatprep.subr.bf16.mxu0 0
  %810 = vmatpush1.bf16.msra.mxu0 %v779
  %811 = vmatprep.subr.bf16.mxu0 0
  %812 = vmatpush2.bf16.msra.mxu0 0
  %813 = vmatprep.subr.bf16.mxu0 0
  %814 = vmatpush2.bf16.msra.mxu0 0
  %815 = vmatprep.subr.bf16.mxu0 0
  %816 = vmatpush2.bf16.msra.mxu0 0
  %817 = vmatprep.subr.bf16.mxu0 0
  %818 = vmatpush2.bf16.msra.mxu0 0
  %819 = vmatprep.subr.bf16.mxu0 0
  %820 = vmatpush2.bf16.msra.mxu0 0
  %821 = vmatprep.subr.bf16.mxu0 0
  %822 = vmatpush2.bf16.msra.mxu0 0
  %823 = vmatprep.subr.bf16.mxu0 0
  %824 = vmatpush2.bf16.msra.mxu0 0
  %825 = vmatprep.subr.bf16.mxu0 0
  %826 = vmatpush2.bf16.msra.mxu0 0
  %827 = vmatprep.mubr.bf16.mxu0 0
  %828 = vmatmul.mubr.bf16.gmra.mxu0 %v732
  %v829 = vpop.f32.mrf.mxu0
  %v830 = vadd.f32 0.0, %v829
  %v831 = vpop.f32.mrf.mxu0
  %v832 = vpop.f32.mrf.mxu0
  %v833 = vadd.f32 0.0, %v832
  %v834 = vpop.f32.mrf.mxu0
  %835 = vmatprep.mubr.bf16.mxu0 0
  %836 = vmatmul.mubr.bf16.gmra.mxu0 %v744
  %v837 = vpop.f32.mrf.mxu0
  %v838 = vadd.f32 0.0, %v837
  %v839 = vpop.f32.mrf.mxu0
  %v840 = vpop.f32.mrf.mxu0
  %v841 = vadd.f32 0.0, %v840
  %v842 = vpop.f32.mrf.mxu0
  %843 = vdwg.mxu0
  %v844 = vadd.f32 %v698, %v830
  %v845 = vadd.f32 %v699, %v833
  %v846 = vadd.f32 %v700, %v838
  %v847 = vadd.f32 %v701, %v841
  %v848 = vmax.f32 %v844, 0.0
  %v849 = vmax.f32 %v845, 0.0
  %v850 = vmax.f32 %v846, 0.0
  %v851 = vmax.f32 %v847, 0.0
  %852 = vst [vmem:[%s5] sm:$0xff] %v848
  %853 = vst [vmem:[%s5 + $0x8] sm:$0xff] %v849
  %854 = vst [vmem:[%s5 + $0x10] sm:$0xff] %v850
  %855 = vst [vmem:[%s5 + $0x18] sm:$0xff] %v851
  // Predicated region
  $region22: #{box_head_forward.2} parent=0 // pred_check
    _
  $region23: #{box_head_forward.2} parent=0 // pred_check_branch
    %857 = sbr.rel (0) target = $region25
  $region24: #{box_head_forward.2} parent=0 // pred_region
    _
  $region25: #{box_head_forward.2} parent=0 // pred_fallthru
    _
  // Predicated region
  $region26: #{box_head_forward.2} parent=0 // pred_check
    _
  $region27: #{box_head_forward.2} parent=0 // pred_check_branch
    %859 = sbr.rel (0) target = $region29
  $region28: #{box_head_forward.2} parent=0 // pred_region
    _
  $region29: #{box_head_forward.2} parent=0 // pred_fallthru
    _

</llo_original>
